<compile_context>
chip_gen: v7x
topology: tpu7x:2x2x1
jax: 0.10.0
libtpu: 0.0.40
codegen_flags: <defaults>
</compile_context>

<pallas_src>
import numpy as np
import jax
import jax.numpy as jnp
from jax.experimental import pallas as pl
from jax.experimental.pallas import tpu as pltpu

NUM_CLASSES = 12
LANE = 128          # head output padded to a lane-dense 128-wide slab
G_PIX = 256         # 16x16 GLU-branch pixels
G_IN = 8            # 3 RGB channels zero-padded to an 8-wide contraction tile
G_CH = 32           # GLU-branch feature channels
H_CH = 512          # ResNet-branch channels
NCORES = 2          # leading "parallel" grid axis so both v7x TCs get work


# ----------------------------------------------------------------------------
# Bilinear interpolation matrix matching F.interpolate(align_corners=False)
# ----------------------------------------------------------------------------
def _bilinear_matrix_np(in_size: int, out_size: int) -> np.ndarray:
    if in_size == out_size:
        return np.eye(in_size, dtype=np.float32)
    M = np.zeros((out_size, in_size), dtype=np.float32)
    scale = in_size / out_size
    for o in range(out_size):
        src = (o + 0.5) * scale - 0.5
        src = max(src, 0.0)
        i0 = int(np.floor(src))
        i1 = min(i0 + 1, in_size - 1)
        w1 = src - i0
        M[o, i0] += 1.0 - w1
        M[o, i1] += w1
    return M


_R7_NP = _bilinear_matrix_np(16, 7)                                  # (7, 16)
# column-mean of kron(r7, r7): folds upsample(16->7) + 7x7 global average pool
_V_ROW_NP = np.kron(_R7_NP, _R7_NP).mean(axis=0, keepdims=True)      # (1, 256)


# ----------------------------------------------------------------------------
# Fused Pallas kernel (one batch tile of TB elements per grid step)
# ----------------------------------------------------------------------------
def hiflat_fused_kernel(x3_ref, fhm_ref, wgf_ref, bgf_ref, wglu_ref, bglu_ref,
                        vblk_ref, waf_ref, wfc_ref, bfold_ref, o_ref):
    # x3   : (1, TB*256, 8) bf16  pooled 16x16 RGB pixels (channels padded 3->8)
    # fhm  : (1, TB, 512)   bf16  pre-pooled ResNet-branch feature means
    # wgf  : (8, 32)  bf16, bgf : (1, 32) f32   stand-in 1x1 conv 3->32
    # wglu : (32, 64) bf16, bglu: (1, 64) f32   merged GLU conv [linear | gate]
    # vblk : (TB, TB*256) bf16                  block-diag upsample+mean fold
    # waf  : (64, 128) bf16                     [w_align@w_fc ; zeros], lane-pad
    # wfc  : (512, 128) bf16                    w_fc lane-padded
    # bfold: (1, 128) f32                       b_align@w_fc + b_fc, lane-padded
    # o    : (1, TB, 128) f32
    x3 = x3_ref[0]                                                # (TB*256, 8)
    fhm = fhm_ref[0]                                              # (TB, 512)

    # TODO(synk): CNNRegression conv_layers stand-in (1x1 conv 3->32 + ReLU).
    xg = jnp.maximum(
        jnp.dot(x3, wgf_ref[...], preferred_element_type=jnp.float32)
        + bgf_ref[...], 0.0)                                      # (TB*256, 32) f32

    # Merged GLU: ONE (TB*256,32)@(32,64) dot.  The gate half is aligned onto
    # the linear half's lanes with an XLU roll (shift = width/2, so the
    # rotation direction is irrelevant); lanes 32..63 hold garbage that is
    # cancelled by the zeroed rows 32..63 of waf.  Gating math stays f32.
    y = (jnp.dot(xg.astype(jnp.bfloat16), wglu_ref[...],
                 preferred_element_type=jnp.float32) + bglu_ref[...])
    gate = pltpu.roll(jax.nn.sigmoid(y), shift=G_CH, axis=1)
    glu = (y * gate).astype(jnp.bfloat16)                         # (TB*256, 64)

    # Upsample(16->7) + 7x7 global average pool folded into one MXU dot.
    mean_u = jnp.dot(vblk_ref[...], glu,
                     preferred_element_type=jnp.float32)          # (TB, 64) f32

    out = (jnp.dot(mean_u.astype(jnp.bfloat16), waf_ref[...],
                   preferred_element_type=jnp.float32)
           + jnp.dot(fhm, wfc_ref[...], preferred_element_type=jnp.float32)
           + bfold_ref[...])                                      # (TB, 128) f32
    o_ref[0] = out


def hiflat_fused(x3, fh_mean, fw):
    # x3: (B, 256, 3) f32  |  fh_mean: (B, 512) f32
    B = x3.shape[0]
    nsplit = NCORES if B > 1 else 1
    tb = -(-B // nsplit)                       # ceil(B / nsplit)
    bpad = nsplit * tb
    if bpad != B:
        x3 = jnp.pad(x3, ((0, bpad - B), (0, 0), (0, 0)))
        fh_mean = jnp.pad(fh_mean, ((0, bpad - B), (0, 0)))

    # Pad the 3-channel contraction to 8 and fold batch into the M dimension.
    x3 = jnp.pad(x3, ((0, 0), (0, 0), (0, G_IN - x3.shape[-1])))
    x3 = x3.reshape(nsplit, tb * G_PIX, G_IN).astype(jnp.bfloat16)
    fhm = fh_mean.reshape(nsplit, tb, H_CH).astype(jnp.bfloat16)

    # Block-diagonal upsample+pool fold (trace-time numpy constant).
    vblk = jnp.asarray(np.kron(np.eye(tb, dtype=np.float32), _V_ROW_NP),
                       dtype=jnp.bfloat16)                        # (tb, tb*256)

    wgf, bgf = fw["wgf"], fw["bgf"]
    wglu, bglu = fw["wglu"], fw["bglu"]
    waf, wfc, bfold = fw["waf_ext"], fw["wfc_pad"], fw["bfold"]

    # Raise the scoped-VMEM limit only when the per-step footprint needs it
    # (default scope: 16 MiB v5e / 32 MiB v6e+v7x); cap below v7x's 64 MiB.
    def nb(a):
        return a.size * a.dtype.itemsize
    vmem_need = (2 * (nb(x3) + nb(fhm)) // nsplit
                 + nb(wgf) + nb(bgf) + nb(wglu) + nb(bglu) + nb(vblk)
                 + nb(waf) + nb(wfc) + nb(bfold)
                 + 2 * tb * LANE * 4 + (1 << 20))
    vmem_limit = int(min(vmem_need, 48 << 20)) if vmem_need > (16 << 20) else None

    out = pl.pallas_call(
        hiflat_fused_kernel,
        out_shape=jax.ShapeDtypeStruct((nsplit, tb, LANE), jnp.float32),
        grid=(nsplit,),
        in_specs=[
            pl.BlockSpec((1, tb * G_PIX, G_IN), lambda s: (s, 0, 0)),
            pl.BlockSpec((1, tb, H_CH), lambda s: (s, 0, 0)),
            pl.BlockSpec((G_IN, G_CH), lambda s: (0, 0)),
            pl.BlockSpec((1, G_CH), lambda s: (0, 0)),
            pl.BlockSpec((G_CH, 2 * G_CH), lambda s: (0, 0)),
            pl.BlockSpec((1, 2 * G_CH), lambda s: (0, 0)),
            pl.BlockSpec((tb, tb * G_PIX), lambda s: (0, 0)),
            pl.BlockSpec((2 * G_CH, LANE), lambda s: (0, 0)),
            pl.BlockSpec((H_CH, LANE), lambda s: (0, 0)),
            pl.BlockSpec((1, LANE), lambda s: (0, 0)),
        ],
        out_specs=pl.BlockSpec((1, tb, LANE), lambda s: (s, 0, 0)),
        compiler_params=pltpu.CompilerParams(
            dimension_semantics=("parallel",),
            vmem_limit_bytes=vmem_limit),
    )(x3, fhm, wgf, bgf, wglu, bglu, vblk, waf, wfc, bfold)
    return out.reshape(bpad, LANE)[:B, :NUM_CLASSES]               # (B, 12)


# ----------------------------------------------------------------------------
# Parameter init (deterministic, synthetic weights)
# ----------------------------------------------------------------------------
def init_params(key):
    ks = jax.random.split(key, 10)

    def rnd(k, shape, scale=0.05):
        return scale * jax.random.normal(k, shape, jnp.float32)

    return {
        # TODO(synk): CNNRegression (self.g) is undefined in the source module;
        # its conv_layers are replaced by a synthetic pool + 1x1 conv -> 32 ch.
        "wg_feat": rnd(ks[0], (3, 32)),
        "bg_feat": rnd(ks[1], (32,)),
        # TODO(synk): pretrained ResNet18 (self.h) backbone is replaced by a
        # synthetic resize + 1x1 conv producing a (B, 7, 7, 512) feature map.
        "wh_feat": rnd(ks[2], (3, 512)),
        "bh_feat": rnd(ks[3], (512,)),
        # GLUWithWeights: Conv2d(32, 64, 1) + GLU(dim=channels)
        "w_glu": rnd(ks[4], (32, 64)),
        "b_glu": rnd(ks[5], (64,)),
        # nn.Conv2d(32, 512, 1) created inside forward()
        "w_align": rnd(ks[6], (32, 512)),
        "b_align": rnd(ks[7], (512,)),
        # self.fc = nn.Linear(512, 12)
        "w_fc": rnd(ks[8], (512, 12)),
        "b_fc": rnd(ks[9], (12,)),
    }


def prepare_fused_weights(params):
    """Called ONCE outside the per-call path: folds the linear tail, pads to
    lane-dense shapes and casts heavy matmul operands to bf16."""
    w_af = params["w_align"] @ params["w_fc"]                       # (32, 12)
    b_fold = (params["b_align"].reshape(1, H_CH) @ params["w_fc"]
              + params["b_fc"].reshape(1, NUM_CLASSES))             # (1, 12)

    def pad_cols(m):
        return jnp.pad(m, ((0, 0), (0, LANE - m.shape[1])))

    # rows 32..63 zeroed so the rolled GLU gate's garbage lanes cancel.
    waf_ext = jnp.concatenate(
        [pad_cols(w_af), jnp.zeros((G_CH, LANE), jnp.float32)], axis=0)

    wgf = jnp.pad(params["wg_feat"], ((0, G_IN - 3), (0, 0)))        # (8, 32)

    return {
        "wgf": wgf.astype(jnp.bfloat16),
        "bgf": params["bg_feat"].reshape(1, G_CH).astype(jnp.float32),
        "wglu": params["w_glu"].astype(jnp.bfloat16),                # [lin | gate]
        "bglu": params["b_glu"].reshape(1, 2 * G_CH).astype(jnp.float32),
        "waf_ext": waf_ext.astype(jnp.bfloat16),
        "wfc_pad": pad_cols(params["w_fc"]).astype(jnp.bfloat16),
        "bfold": pad_cols(b_fold).astype(jnp.float32),
        # h-branch stand-in params stay f32 in the plain-JAX glue.
        "wh_feat": params["wh_feat"],
        "bh_feat": params["bh_feat"],
    }


# ----------------------------------------------------------------------------
# Backbone glue (plain JAX) + full forward
# ----------------------------------------------------------------------------
IMAGENET_MEAN = jnp.asarray([0.485, 0.456, 0.406], jnp.float32).reshape(1, 3, 1, 1)
IMAGENET_STD = jnp.asarray([0.229, 0.224, 0.225], jnp.float32).reshape(1, 3, 1, 1)


def _backbone_features(wh_feat, bh_feat, x):
    # x: (B, 3, H, W) NCHW, like PyTorch.
    B, C, H, W = x.shape
    x = x.astype(jnp.float32)

    # resized_x1 = F.interpolate(x, size=(64, 64), bilinear, align_corners=False)
    rh64 = jnp.asarray(_bilinear_matrix_np(H, 64))
    rw64 = jnp.asarray(_bilinear_matrix_np(W, 64))
    resized_x1 = jnp.einsum("bchw,ph,qw->bcpq", x, rh64, rw64)       # (B,3,64,64)

    # TODO(synk): g.conv_layers stand-in -> 4x4 mean pool to 16x16; the 1x1
    # conv 3->32 + ReLU is fused into the Pallas kernel.
    pooled_g = resized_x1.reshape(B, 3, 16, 4, 16, 4).mean(axis=(3, 5))
    x3 = jnp.transpose(pooled_g, (0, 2, 3, 1)).reshape(B, G_PIX, 3)  # (B,256,3)

    # normalized_x2 = Normalize(ImageNet mean/std)(x)
    normalized_x2 = (x - IMAGENET_MEAN) / IMAGENET_STD

    # TODO(synk): resnet18 feature-extractor stand-in -> (B,7,7,512)
    rh7 = jnp.asarray(_bilinear_matrix_np(H, 7))
    rw7 = jnp.asarray(_bilinear_matrix_np(W, 7))
    h_small = jnp.einsum("bchw,ph,qw->bcpq", normalized_x2, rh7, rw7)
    h_nhwc = jnp.transpose(h_small, (0, 2, 3, 1))                    # (B,7,7,3)
    features_h = jax.nn.relu(h_nhwc @ wh_feat + bh_feat)
    fh_pix = features_h.reshape(B, 7 * 7, H_CH)                      # (B,49,512)
    return x3, fh_pix


def hiflatnet_forward(fused, x):
    x3, fh_pix = _backbone_features(fused["wh_feat"], fused["bh_feat"], x)
    # fh only enters the head through its global average pool, so pre-pool it
    # here (drops per-element kernel DMA ~50x).
    fh_mean = fh_pix.mean(axis=1)                                    # (B, 512)
    return hiflat_fused(x3, fh_mean, fused)


def hiflatnet_reference(params, x):
    # Unfused pure-f32 reference matching the original module's op order.
    B = x.shape[0]
    x3, fh_pix = _backbone_features(params["wh_feat"], params["bh_feat"], x)
    xg = jax.nn.relu(x3 @ params["wg_feat"] + params["bg_feat"])     # (B,256,32)
    y = xg @ params["w_glu"] + params["b_glu"]                       # (B,256,64)
    glu = y[..., :G_CH] * jax.nn.sigmoid(y[..., G_CH:])              # (B,256,32)
    glu = glu.reshape(B, 16, 16, G_CH)
    r7 = jnp.asarray(_R7_NP)
    ups = jnp.einsum("bhwc,ph,qw->bpqc", glu, r7, r7).reshape(B, 49, G_CH)
    aligned = ups @ params["w_align"] + params["b_align"]            # (B,49,512)
    combined = aligned + fh_pix
    gap = combined.mean(axis=1)                                      # (B,512)
    return gap @ params["w_fc"] + params["b_fc"]                     # (B,12)


if __name__ == "__main__":
    key = jax.random.PRNGKey(0)
    pkey, xkey = jax.random.split(key)
    params = init_params(pkey)
    prepared = prepare_fused_weights(params)   # hoisted out of the per-call path
    x = jax.random.normal(xkey, (2, 3, 32, 32), jnp.float32)  # NCHW, like PyTorch

    fwd = jax.jit(hiflatnet_forward)
    out = jax.block_until_ready(fwd(prepared, x))
    assert out.shape == (2, NUM_CLASSES), out.shape
    assert bool(jnp.all(jnp.isfinite(out)))

    # The fold is exact; bf16 matmul operands (f32 accumulation) set the
    # tolerance here.
    ref = hiflatnet_reference(params, x)
    assert bool(jnp.allclose(out, ref, rtol=2e-2, atol=2e-2)), \
        float(jnp.max(jnp.abs(out - ref)))

    print("KERNEL_OK")
</pallas_src>

<mosaic_0001>
module attributes {stable_mosaic.version = 11 : i64} {
  func.func @hiflat_fused_kernel(%arg0: i32, %arg1: memref<1x256x8xbf16, #tpu.memory_space<vmem>>, %arg2: memref<1x1x512xbf16, #tpu.memory_space<vmem>>, %arg3: memref<8x32xbf16, #tpu.memory_space<vmem>>, %arg4: memref<1x32xf32, #tpu.memory_space<vmem>>, %arg5: memref<32x64xbf16, #tpu.memory_space<vmem>>, %arg6: memref<1x64xf32, #tpu.memory_space<vmem>>, %arg7: memref<1x256xbf16, #tpu.memory_space<vmem>>, %arg8: memref<64x128xbf16, #tpu.memory_space<vmem>>, %arg9: memref<512x128xbf16, #tpu.memory_space<vmem>>, %arg10: memref<1x128xf32, #tpu.memory_space<vmem>>, %arg11: memref<1x1x128xf32, #tpu.memory_space<vmem>>) attributes {dimension_semantics = [#tpu.dimension_semantics<parallel>], iteration_bounds = array<i64: 2>, scalar_prefetch = 0 : i64, scratch_operands = 0 : i64, tpu.core_type = #tpu.core_type<tc>, window_params = [{transform_indices = @transform_0, window_bounds = array<i64: 1, 256, 8>}, {transform_indices = @transform_1, window_bounds = array<i64: 1, 1, 512>}, {pipeline_mode = #tpu.pipeline_mode<synchronous>, transform_indices = @transform_2, window_bounds = array<i64: 8, 32>}, {pipeline_mode = #tpu.pipeline_mode<synchronous>, transform_indices = @transform_3, window_bounds = array<i64: 1, 32>}, {pipeline_mode = #tpu.pipeline_mode<synchronous>, transform_indices = @transform_4, window_bounds = array<i64: 32, 64>}, {pipeline_mode = #tpu.pipeline_mode<synchronous>, transform_indices = @transform_5, window_bounds = array<i64: 1, 64>}, {pipeline_mode = #tpu.pipeline_mode<synchronous>, transform_indices = @transform_6, window_bounds = array<i64: 1, 256>}, {pipeline_mode = #tpu.pipeline_mode<synchronous>, transform_indices = @transform_7, window_bounds = array<i64: 64, 128>}, {pipeline_mode = #tpu.pipeline_mode<synchronous>, transform_indices = @transform_8, window_bounds = array<i64: 512, 128>}, {pipeline_mode = #tpu.pipeline_mode<synchronous>, transform_indices = @transform_9, window_bounds = array<i64: 1, 128>}, {transform_indices = @transform_10, window_bounds = array<i64: 1, 1, 128>}]} {
    %c0 = arith.constant 0 : index
    %c0_0 = arith.constant 0 : index
    %c0_1 = arith.constant 0 : index
    %0 = vector.load %arg1[%c0, %c0_0, %c0_1] : memref<1x256x8xbf16, #tpu.memory_space<vmem>>, vector<1x256x8xbf16>
    %1 = vector.shape_cast %0 : vector<1x256x8xbf16> to vector<256x8xbf16>
    %c0_2 = arith.constant 0 : index
    %c0_3 = arith.constant 0 : index
    %c0_4 = arith.constant 0 : index
    %2 = vector.load %arg2[%c0_2, %c0_3, %c0_4] : memref<1x1x512xbf16, #tpu.memory_space<vmem>>, vector<1x1x512xbf16>
    %3 = vector.shape_cast %2 : vector<1x1x512xbf16> to vector<1x512xbf16>
    %c0_5 = arith.constant 0 : index
    %c0_6 = arith.constant 0 : index
    %4 = vector.load %arg3[%c0_5, %c0_6] : memref<8x32xbf16, #tpu.memory_space<vmem>>, vector<8x32xbf16>
    %cst = arith.constant dense<0.000000e+00> : vector<256x32xf32>
    %5 = tpu.matmul %1, %4, %cst {dimension_numbers = #tpu.dot_dimension_numbers<[1], [0], [0], [1], [0, 0, 1, 1], [], []>} : vector<256x8xbf16>, vector<8x32xbf16>, vector<256x32xf32> -> vector<256x32xf32>
    %c0_7 = arith.constant 0 : index
    %c0_8 = arith.constant 0 : index
    %6 = vector.load %arg4[%c0_7, %c0_8] : memref<1x32xf32, #tpu.memory_space<vmem>>, vector<1x32xf32>
    %7 = vector.broadcast %6 : vector<1x32xf32> to vector<256x32xf32>
    %8 = arith.addf %5, %7 : vector<256x32xf32>
    %cst_9 = arith.constant 0.000000e+00 : f32
    %9 = vector.broadcast %cst_9 : f32 to vector<256x32xf32>
    %10 = arith.maximumf %8, %9 : vector<256x32xf32>
    %11 = arith.truncf %10 : vector<256x32xf32> to vector<256x32xbf16>
    %c0_10 = arith.constant 0 : index
    %c0_11 = arith.constant 0 : index
    %12 = vector.load %arg5[%c0_10, %c0_11] : memref<32x64xbf16, #tpu.memory_space<vmem>>, vector<32x64xbf16>
    %cst_12 = arith.constant dense<0.000000e+00> : vector<256x64xf32>
    %13 = tpu.matmul %11, %12, %cst_12 {dimension_numbers = #tpu.dot_dimension_numbers<[1], [0], [0], [1], [0, 0, 1, 1], [], []>} : vector<256x32xbf16>, vector<32x64xbf16>, vector<256x64xf32> -> vector<256x64xf32>
    %c0_13 = arith.constant 0 : index
    %c0_14 = arith.constant 0 : index
    %14 = vector.load %arg6[%c0_13, %c0_14] : memref<1x64xf32, #tpu.memory_space<vmem>>, vector<1x64xf32>
    %15 = vector.broadcast %14 : vector<1x64xf32> to vector<256x64xf32>
    %16 = arith.addf %13, %15 : vector<256x64xf32>
    %17 = arith.negf %16 : vector<256x64xf32>
    %18 = math.exp %17 : vector<256x64xf32>
    %cst_15 = arith.constant 1.000000e+00 : f32
    %19 = vector.broadcast %cst_15 : f32 to vector<256x64xf32>
    %20 = arith.addf %19, %18 : vector<256x64xf32>
    %21 = arith.divf %19, %20 : vector<256x64xf32>
    %c32_i32 = arith.constant 32 : i32
    %22 = tpu.dynamic_rotate %21 by %c32_i32 dim 1 : vector<256x64xf32>, i32 -> vector<256x64xf32>
    %23 = arith.mulf %16, %22 : vector<256x64xf32>
    %24 = arith.truncf %23 : vector<256x64xf32> to vector<256x64xbf16>
    %c0_16 = arith.constant 0 : index
    %c0_17 = arith.constant 0 : index
    %25 = vector.load %arg7[%c0_16, %c0_17] : memref<1x256xbf16, #tpu.memory_space<vmem>>, vector<1x256xbf16>
    %cst_18 = arith.constant dense<0.000000e+00> : vector<1x64xf32>
    %26 = tpu.matmul %25, %24, %cst_18 {dimension_numbers = #tpu.dot_dimension_numbers<[1], [0], [0], [1], [0, 0, 1, 1], [], []>} : vector<1x256xbf16>, vector<256x64xbf16>, vector<1x64xf32> -> vector<1x64xf32>
    %27 = arith.truncf %26 : vector<1x64xf32> to vector<1x64xbf16>
    %c0_19 = arith.constant 0 : index
    %c0_20 = arith.constant 0 : index
    %28 = vector.load %arg8[%c0_19, %c0_20] : memref<64x128xbf16, #tpu.memory_space<vmem>>, vector<64x128xbf16>
    %cst_21 = arith.constant dense<0.000000e+00> : vector<1x128xf32>
    %29 = tpu.matmul %27, %28, %cst_21 {dimension_numbers = #tpu.dot_dimension_numbers<[1], [0], [0], [1], [0, 0, 1, 1], [], []>} : vector<1x64xbf16>, vector<64x128xbf16>, vector<1x128xf32> -> vector<1x128xf32>
    %c0_22 = arith.constant 0 : index
    %c0_23 = arith.constant 0 : index
    %30 = vector.load %arg9[%c0_22, %c0_23] : memref<512x128xbf16, #tpu.memory_space<vmem>>, vector<512x128xbf16>
    %cst_24 = arith.constant dense<0.000000e+00> : vector<1x128xf32>
    %31 = tpu.matmul %3, %30, %cst_24 {dimension_numbers = #tpu.dot_dimension_numbers<[1], [0], [0], [1], [0, 0, 1, 1], [], []>} : vector<1x512xbf16>, vector<512x128xbf16>, vector<1x128xf32> -> vector<1x128xf32>
    %32 = arith.addf %29, %31 : vector<1x128xf32>
    %c0_25 = arith.constant 0 : index
    %c0_26 = arith.constant 0 : index
    %33 = vector.load %arg10[%c0_25, %c0_26] : memref<1x128xf32, #tpu.memory_space<vmem>>, vector<1x128xf32>
    %34 = arith.addf %32, %33 : vector<1x128xf32>
    %c0_27 = arith.constant 0 : index
    %c0_28 = arith.constant 0 : index
    %c0_29 = arith.constant 0 : index
    %35 = vector.load %arg11[%c0_27, %c0_28, %c0_29] : memref<1x1x128xf32, #tpu.memory_space<vmem>>, vector<1x1x128xf32>
    %36 = vector.shape_cast %35 : vector<1x1x128xf32> to vector<1x128xf32>
    %37 = vector.shape_cast %34 : vector<1x128xf32> to vector<1x1x128xf32>
    tpu.vector_store %arg11[%c0_27, %c0_28, %c0_29], %37 {strides = array<i32>} : memref<1x1x128xf32, #tpu.memory_space<vmem>>, vector<1x1x128xf32>,
    return
  }
  func.func @transform_0(%arg0: i32) -> (i32, i32, i32) {
    %c0_i32 = arith.constant 0 : i32
    %c0_i32_0 = arith.constant 0 : i32
    %c0_i32_1 = arith.constant 0 : i32
    return %arg0, %c0_i32, %c0_i32_0 : i32, i32, i32
  }
  func.func @transform_1(%arg0: i32) -> (i32, i32, i32) {
    %c0_i32 = arith.constant 0 : i32
    %c0_i32_0 = arith.constant 0 : i32
    %c0_i32_1 = arith.constant 0 : i32
    return %arg0, %c0_i32, %c0_i32_0 : i32, i32, i32
  }
  func.func @transform_2(%arg0: i32) -> (i32, i32) {
    %c0_i32 = arith.constant 0 : i32
    %c0_i32_0 = arith.constant 0 : i32
    %c0_i32_1 = arith.constant 0 : i32
    return %c0_i32, %c0_i32_0 : i32, i32
  }
  func.func @transform_3(%arg0: i32) -> (i32, i32) {
    %c0_i32 = arith.constant 0 : i32
    %c0_i32_0 = arith.constant 0 : i32
    %c0_i32_1 = arith.constant 0 : i32
    return %c0_i32, %c0_i32_0 : i32, i32
  }
  func.func @transform_4(%arg0: i32) -> (i32, i32) {
    %c0_i32 = arith.constant 0 : i32
    %c0_i32_0 = arith.constant 0 : i32
    %c0_i32_1 = arith.constant 0 : i32
    return %c0_i32, %c0_i32_0 : i32, i32
  }
  func.func @transform_5(%arg0: i32) -> (i32, i32) {
    %c0_i32 = arith.constant 0 : i32
    %c0_i32_0 = arith.constant 0 : i32
    %c0_i32_1 = arith.constant 0 : i32
    return %c0_i32, %c0_i32_0 : i32, i32
  }
  func.func @transform_6(%arg0: i32) -> (i32, i32) {
    %c0_i32 = arith.constant 0 : i32
    %c0_i32_0 = arith.constant 0 : i32
    %c0_i32_1 = arith.constant 0 : i32
    return %c0_i32, %c0_i32_0 : i32, i32
  }
  func.func @transform_7(%arg0: i32) -> (i32, i32) {
    %c0_i32 = arith.constant 0 : i32
    %c0_i32_0 = arith.constant 0 : i32
    %c0_i32_1 = arith.constant 0 : i32
    return %c0_i32, %c0_i32_0 : i32, i32
  }
  func.func @transform_8(%arg0: i32) -> (i32, i32) {
    %c0_i32 = arith.constant 0 : i32
    %c0_i32_0 = arith.constant 0 : i32
    %c0_i32_1 = arith.constant 0 : i32
    return %c0_i32, %c0_i32_0 : i32, i32
  }
  func.func @transform_9(%arg0: i32) -> (i32, i32) {
    %c0_i32 = arith.constant 0 : i32
    %c0_i32_0 = arith.constant 0 : i32
    %c0_i32_1 = arith.constant 0 : i32
    return %c0_i32, %c0_i32_0 : i32, i32
  }
  func.func @transform_10(%arg0: i32) -> (i32, i32, i32) {
    %c0_i32 = arith.constant 0 : i32
    %c0_i32_0 = arith.constant 0 : i32
    %c0_i32_1 = arith.constant 0 : i32
    return %arg0, %c0_i32, %c0_i32_0 : i32, i32, i32
  }
}

</mosaic_0001>

<llo_original>
// kernel: hiflatnet_forward.1
$region0: #{hiflatnet_forward.1}
  #allocation0 [shape = 'u32[]', space=smem, size = 0x4, offset = 0x4, fixed_abs, tag = 'smem constant byte address 0x4 - core index']
  #allocation1 [shape = 'u32[144,128]{1,0:T(1,128)}', space=vmem, size = 0x12000, scoped, tag = 'internal scratch']
  %s0 = inlined_call_operand.vmem [shape: bf16[2,256,8], index: 0, kind: input, shape index: {}]
  %s1 = inlined_call_operand.vmem [shape: bf16[2,1,512], index: 1, kind: input, shape index: {}]
  %s2 = inlined_call_operand.vmem [shape: bf16[8,32], index: 2, kind: input, shape index: {}]
  %s3 = inlined_call_operand.vmem [shape: f32[1,32], index: 3, kind: input, shape index: {}]
  %s4 = inlined_call_operand.vmem [shape: bf16[32,64], index: 4, kind: input, shape index: {}]
  %s5 = inlined_call_operand.vmem [shape: f32[1,64], index: 5, kind: input, shape index: {}]
  %s6 = inlined_call_operand.vmem [shape: bf16[1,256], index: 6, kind: input, shape index: {}]
  %s7 = inlined_call_operand.vmem [shape: bf16[64,128], index: 7, kind: input, shape index: {}]
  %s8 = inlined_call_operand.vmem [shape: bf16[512,128], index: 8, kind: input, shape index: {}]
  %s9 = inlined_call_operand.vmem [shape: f32[1,128], index: 9, kind: input, shape index: {}]
  %s10 = inlined_call_operand.hbm [shape: f32[2,1,128], index: 10, kind: output, shape index: {}]
  %s11 = sld [smem:[#allocation0]]
  $region73: #{hiflatnet_forward.1} parent=0
    _
  %s13 = ssub.s32 1, %s11
  %s14 = scalar_select 0, %s13, %s11
  $region1: #{hiflatnet_forward.1} parent=0
    #allocation2 [shape = 'u8[1024]{0}', space=vmem, size = 0x400, scoped, tag = 'output window, operand 0']
    #allocation3 [shape = 's32[2]{0}', space=sflag, size = 0x8, scoped, tag = 'scoped memory for hiflatnet_forward.1']
    %15 = vsyncpa [#allocation3], 0
    %s16 = scalar_lea.sflag [#allocation3], 1
    %17 = vsyncpa %s16, 0
    loop: start=0, step=1, limit=4
    $region2: #{hiflatnet_forward.1} parent=1 // loop_pre_header
      _
    $region3: #{hiflatnet_forward.1} parent=1 // loop_header
      %s19 = sphi 0, %s23
      %p20 = scmp.ge.s32.totalorder %s19, 4
      %s29 = sphi 0, %s31
      %s32 = sphi 0, %s29
      %s33 = sphi 0, %s32
      %s49 = sphi 0, %s33
      %s55 = sphi 0, %s57
      %s58 = sphi 0, %s55
      %s59 = sphi 0, %s58
      %s75 = sphi 0, %s59
      %s79 = sphi 0, %s79
      %s81 = sphi 0, %s79
      %s82 = sphi 0, %s81
      %s96 = sphi 0, %s82
      %s100 = sphi 0, %s100
      %s102 = sphi 0, %s100
      %s103 = sphi 0, %s102
      %s117 = sphi 0, %s103
      %s121 = sphi 0, %s121
      %s123 = sphi 0, %s121
      %s124 = sphi 0, %s123
      %s138 = sphi 0, %s124
      %s142 = sphi 0, %s142
      %s144 = sphi 0, %s142
      %s145 = sphi 0, %s144
      %s159 = sphi 0, %s145
      %s163 = sphi 0, %s163
      %s165 = sphi 0, %s163
      %s166 = sphi 0, %s165
      %s180 = sphi 0, %s166
      %s184 = sphi 0, %s184
      %s186 = sphi 0, %s184
      %s187 = sphi 0, %s186
      %s201 = sphi 0, %s187
      %s205 = sphi 0, %s205
      %s207 = sphi 0, %s205
      %s208 = sphi 0, %s207
      %s222 = sphi 0, %s208
      %s226 = sphi 0, %s226
      %s228 = sphi 0, %s226
      %s229 = sphi 0, %s228
      %s243 = sphi 0, %s229
      %s249 = sphi 0, %s251
      %s252 = sphi 0, %s249
      %s253 = sphi 0, %s252
      %s269 = sphi 0, %s253
    $region4: #{hiflatnet_forward.1} parent=1 // loop_header_branch
      %22 = sbr.rel (%p20) target = $region8
    $region5: #{hiflatnet_forward.1} parent=1 // loop_body
      %s24 = ssub.s32 %s19, 1
      %s25 = ssub.s32 %s19, 2
      %s26 = sadd.s32 %s19, 1
      %s27 = ssub.s32 %s19, %s26
      %p28 = scmp.eq.s32.totalorder %s27, 0
      %s30 = sadd.s32 %s29, 1
      %s31 = scalar_select %p28, %s29, %s30
      %p34 = pneg %p28
      %p35 = scmp.eq.s32.totalorder %s19, 1
      %p36 = por %p34, %p35
      %p37 = scmp.ne.s32.totalorder %s29, %s32
      %p38 = scmp.eq.s32.totalorder %s19, 0
      %p39 = por %p37, %p38
      %p40 = scmp.ne.s32.totalorder %s29, %s32
      %p41 = scmp.eq.s32.totalorder %s24, 1
      %p42 = por %p40, %p41
      %p43 = scmp.ne.s32.totalorder %s32, %s33
      %p44 = scmp.eq.s32.totalorder %s24, 0
      %p45 = por %p43, %p44
      %p46 = scmp.ne.s32.totalorder %s32, %s33
      %p47 = scmp.eq.s32.totalorder %s25, 1
      %p48 = por %p46, %p47
      %p50 = scmp.ne.s32.totalorder %s33, %s49
      %p51 = scmp.eq.s32.totalorder %s25, 0
      %p52 = por %p50, %p51
      %s53 = ssub.s32 %s19, %s26
      %p54 = scmp.eq.s32.totalorder %s53, 0
      %s56 = sadd.s32 %s55, 1
      %s57 = scalar_select %p54, %s55, %s56
      %p60 = pneg %p54
      %p61 = scmp.eq.s32.totalorder %s19, 1
      %p62 = por %p60, %p61
      %p63 = scmp.ne.s32.totalorder %s55, %s58
      %p64 = scmp.eq.s32.totalorder %s19, 0
      %p65 = por %p63, %p64
      %p66 = scmp.ne.s32.totalorder %s55, %s58
      %p67 = scmp.eq.s32.totalorder %s24, 1
      %p68 = por %p66, %p67
      %p69 = scmp.ne.s32.totalorder %s58, %s59
      %p70 = scmp.eq.s32.totalorder %s24, 0
      %p71 = por %p69, %p70
      %p72 = scmp.ne.s32.totalorder %s58, %s59
      %p73 = scmp.eq.s32.totalorder %s25, 1
      %p74 = por %p72, %p73
      %p76 = scmp.ne.s32.totalorder %s59, %s75
      %p77 = scmp.eq.s32.totalorder %s25, 0
      %p78 = por %p76, %p77
      %s80 = sadd.s32 %s79, 1
      %p83 = scmp.eq.s32.totalorder %s19, 1
      %p84 = scmp.ne.s32.totalorder %s79, %s81
      %p85 = scmp.eq.s32.totalorder %s19, 0
      %p86 = por %p84, %p85
      %p87 = scmp.ne.s32.totalorder %s79, %s81
      %p88 = scmp.eq.s32.totalorder %s24, 1
      %p89 = por %p87, %p88
      %p90 = scmp.ne.s32.totalorder %s81, %s82
      %p91 = scmp.eq.s32.totalorder %s24, 0
      %p92 = por %p90, %p91
      %p93 = scmp.ne.s32.totalorder %s81, %s82
      %p94 = scmp.eq.s32.totalorder %s25, 1
      %p95 = por %p93, %p94
      %p97 = scmp.ne.s32.totalorder %s82, %s96
      %p98 = scmp.eq.s32.totalorder %s25, 0
      %p99 = por %p97, %p98
      %s101 = sadd.s32 %s100, 1
      %p104 = scmp.eq.s32.totalorder %s19, 1
      %p105 = scmp.ne.s32.totalorder %s100, %s102
      %p106 = scmp.eq.s32.totalorder %s19, 0
      %p107 = por %p105, %p106
      %p108 = scmp.ne.s32.totalorder %s100, %s102
      %p109 = scmp.eq.s32.totalorder %s24, 1
      %p110 = por %p108, %p109
      %p111 = scmp.ne.s32.totalorder %s102, %s103
      %p112 = scmp.eq.s32.totalorder %s24, 0
      %p113 = por %p111, %p112
      %p114 = scmp.ne.s32.totalorder %s102, %s103
      %p115 = scmp.eq.s32.totalorder %s25, 1
      %p116 = por %p114, %p115
      %p118 = scmp.ne.s32.totalorder %s103, %s117
      %p119 = scmp.eq.s32.totalorder %s25, 0
      %p120 = por %p118, %p119
      %s122 = sadd.s32 %s121, 1
      %p125 = scmp.eq.s32.totalorder %s19, 1
      %p126 = scmp.ne.s32.totalorder %s121, %s123
      %p127 = scmp.eq.s32.totalorder %s19, 0
      %p128 = por %p126, %p127
      %p129 = scmp.ne.s32.totalorder %s121, %s123
      %p130 = scmp.eq.s32.totalorder %s24, 1
      %p131 = por %p129, %p130
      %p132 = scmp.ne.s32.totalorder %s123, %s124
      %p133 = scmp.eq.s32.totalorder %s24, 0
      %p134 = por %p132, %p133
      %p135 = scmp.ne.s32.totalorder %s123, %s124
      %p136 = scmp.eq.s32.totalorder %s25, 1
      %p137 = por %p135, %p136
      %p139 = scmp.ne.s32.totalorder %s124, %s138
      %p140 = scmp.eq.s32.totalorder %s25, 0
      %p141 = por %p139, %p140
      %s143 = sadd.s32 %s142, 1
      %p146 = scmp.eq.s32.totalorder %s19, 1
      %p147 = scmp.ne.s32.totalorder %s142, %s144
      %p148 = scmp.eq.s32.totalorder %s19, 0
      %p149 = por %p147, %p148
      %p150 = scmp.ne.s32.totalorder %s142, %s144
      %p151 = scmp.eq.s32.totalorder %s24, 1
      %p152 = por %p150, %p151
      %p153 = scmp.ne.s32.totalorder %s144, %s145
      %p154 = scmp.eq.s32.totalorder %s24, 0
      %p155 = por %p153, %p154
      %p156 = scmp.ne.s32.totalorder %s144, %s145
      %p157 = scmp.eq.s32.totalorder %s25, 1
      %p158 = por %p156, %p157
      %p160 = scmp.ne.s32.totalorder %s145, %s159
      %p161 = scmp.eq.s32.totalorder %s25, 0
      %p162 = por %p160, %p161
      %s164 = sadd.s32 %s163, 1
      %p167 = scmp.eq.s32.totalorder %s19, 1
      %p168 = scmp.ne.s32.totalorder %s163, %s165
      %p169 = scmp.eq.s32.totalorder %s19, 0
      %p170 = por %p168, %p169
      %p171 = scmp.ne.s32.totalorder %s163, %s165
      %p172 = scmp.eq.s32.totalorder %s24, 1
      %p173 = por %p171, %p172
      %p174 = scmp.ne.s32.totalorder %s165, %s166
      %p175 = scmp.eq.s32.totalorder %s24, 0
      %p176 = por %p174, %p175
      %p177 = scmp.ne.s32.totalorder %s165, %s166
      %p178 = scmp.eq.s32.totalorder %s25, 1
      %p179 = por %p177, %p178
      %p181 = scmp.ne.s32.totalorder %s166, %s180
      %p182 = scmp.eq.s32.totalorder %s25, 0
      %p183 = por %p181, %p182
      %s185 = sadd.s32 %s184, 1
      %p188 = scmp.eq.s32.totalorder %s19, 1
      %p189 = scmp.ne.s32.totalorder %s184, %s186
      %p190 = scmp.eq.s32.totalorder %s19, 0
      %p191 = por %p189, %p190
      %p192 = scmp.ne.s32.totalorder %s184, %s186
      %p193 = scmp.eq.s32.totalorder %s24, 1
      %p194 = por %p192, %p193
      %p195 = scmp.ne.s32.totalorder %s186, %s187
      %p196 = scmp.eq.s32.totalorder %s24, 0
      %p197 = por %p195, %p196
      %p198 = scmp.ne.s32.totalorder %s186, %s187
      %p199 = scmp.eq.s32.totalorder %s25, 1
      %p200 = por %p198, %p199
      %p202 = scmp.ne.s32.totalorder %s187, %s201
      %p203 = scmp.eq.s32.totalorder %s25, 0
      %p204 = por %p202, %p203
      %s206 = sadd.s32 %s205, 1
      %p209 = scmp.eq.s32.totalorder %s19, 1
      %p210 = scmp.ne.s32.totalorder %s205, %s207
      %p211 = scmp.eq.s32.totalorder %s19, 0
      %p212 = por %p210, %p211
      %p213 = scmp.ne.s32.totalorder %s205, %s207
      %p214 = scmp.eq.s32.totalorder %s24, 1
      %p215 = por %p213, %p214
      %p216 = scmp.ne.s32.totalorder %s207, %s208
      %p217 = scmp.eq.s32.totalorder %s24, 0
      %p218 = por %p216, %p217
      %p219 = scmp.ne.s32.totalorder %s207, %s208
      %p220 = scmp.eq.s32.totalorder %s25, 1
      %p221 = por %p219, %p220
      %p223 = scmp.ne.s32.totalorder %s208, %s222
      %p224 = scmp.eq.s32.totalorder %s25, 0
      %p225 = por %p223, %p224
      %s227 = sadd.s32 %s226, 1
      %p230 = scmp.eq.s32.totalorder %s19, 1
      %p231 = scmp.ne.s32.totalorder %s226, %s228
      %p232 = scmp.eq.s32.totalorder %s19, 0
      %p233 = por %p231, %p232
      %p234 = scmp.ne.s32.totalorder %s226, %s228
      %p235 = scmp.eq.s32.totalorder %s24, 1
      %p236 = por %p234, %p235
      %p237 = scmp.ne.s32.totalorder %s228, %s229
      %p238 = scmp.eq.s32.totalorder %s24, 0
      %p239 = por %p237, %p238
      %p240 = scmp.ne.s32.totalorder %s228, %s229
      %p241 = scmp.eq.s32.totalorder %s25, 1
      %p242 = por %p240, %p241
      %p244 = scmp.ne.s32.totalorder %s229, %s243
      %p245 = scmp.eq.s32.totalorder %s25, 0
      %p246 = por %p244, %p245
      %s247 = ssub.s32 %s19, %s26
      %p248 = scmp.eq.s32.totalorder %s247, 0
      %s250 = sadd.s32 %s249, 1
      %s251 = scalar_select %p248, %s249, %s250
      %p254 = pneg %p248
      %p255 = scmp.eq.s32.totalorder %s19, 1
      %p256 = por %p254, %p255
      %p257 = scmp.ne.s32.totalorder %s249, %s252
      %p258 = scmp.eq.s32.totalorder %s19, 0
      %p259 = por %p257, %p258
      %p260 = scmp.ne.s32.totalorder %s249, %s252
      %p261 = scmp.eq.s32.totalorder %s24, 1
      %p262 = por %p260, %p261
      %p263 = scmp.ne.s32.totalorder %s252, %s253
      %p264 = scmp.eq.s32.totalorder %s24, 0
      %p265 = por %p263, %p264
      %p266 = scmp.ne.s32.totalorder %s252, %s253
      %p267 = scmp.eq.s32.totalorder %s25, 1
      %p268 = por %p266, %p267
      %p270 = scmp.ne.s32.totalorder %s253, %s269
      %p271 = scmp.eq.s32.totalorder %s25, 0
      %p272 = por %p270, %p271
      %p273 = scmp.le.s32.totalorder 1, %s19
      %p274 = scmp.lt.s32.totalorder %s19, 3
      %p275 = pnand %p273, %p274
      %p276 = pneg %p275
      // Predicated region
      $region9: #{hiflatnet_forward.1} parent=5 // pred_check
        _
      $region10: #{hiflatnet_forward.1} parent=5 // pred_check_branch
        %278 = sbr.rel (%p275) target = $region12
      $region11: #{hiflatnet_forward.1} parent=5 // pred_region
        %s279 = ssub.s32 %s19, 1
        // Predicated region
        $region13: #{hiflatnet_forward.1} parent=11 // pred_check
          %p280 = pneg %p92
        $region14: #{hiflatnet_forward.1} parent=11 // pred_check_branch
          %282 = sbr.rel (%p280) target = $region16
        $region15: #{hiflatnet_forward.1} parent=11 // pred_region
          _
        $region16: #{hiflatnet_forward.1} parent=11 // pred_fallthru
          _
        // Predicated region
        $region17: #{hiflatnet_forward.1} parent=11 // pred_check
          %p283 = pneg %p113
        $region18: #{hiflatnet_forward.1} parent=11 // pred_check_branch
          %285 = sbr.rel (%p283) target = $region20
        $region19: #{hiflatnet_forward.1} parent=11 // pred_region
          _
        $region20: #{hiflatnet_forward.1} parent=11 // pred_fallthru
          _
        // Predicated region
        $region21: #{hiflatnet_forward.1} parent=11 // pred_check
          %p286 = pneg %p134
        $region22: #{hiflatnet_forward.1} parent=11 // pred_check_branch
          %288 = sbr.rel (%p286) target = $region24
        $region23: #{hiflatnet_forward.1} parent=11 // pred_region
          _
        $region24: #{hiflatnet_forward.1} parent=11 // pred_fallthru
          _
        // Predicated region
        $region25: #{hiflatnet_forward.1} parent=11 // pred_check
          %p289 = pneg %p155
        $region26: #{hiflatnet_forward.1} parent=11 // pred_check_branch
          %291 = sbr.rel (%p289) target = $region28
        $region27: #{hiflatnet_forward.1} parent=11 // pred_region
          _
        $region28: #{hiflatnet_forward.1} parent=11 // pred_fallthru
          _
        // Predicated region
        $region29: #{hiflatnet_forward.1} parent=11 // pred_check
          %p292 = pneg %p176
        $region30: #{hiflatnet_forward.1} parent=11 // pred_check_branch
          %294 = sbr.rel (%p292) target = $region32
        $region31: #{hiflatnet_forward.1} parent=11 // pred_region
          _
        $region32: #{hiflatnet_forward.1} parent=11 // pred_fallthru
          _
        // Predicated region
        $region33: #{hiflatnet_forward.1} parent=11 // pred_check
          %p295 = pneg %p197
        $region34: #{hiflatnet_forward.1} parent=11 // pred_check_branch
          %297 = sbr.rel (%p295) target = $region36
        $region35: #{hiflatnet_forward.1} parent=11 // pred_region
          _
        $region36: #{hiflatnet_forward.1} parent=11 // pred_fallthru
          _
        // Predicated region
        $region37: #{hiflatnet_forward.1} parent=11 // pred_check
          %p298 = pneg %p218
        $region38: #{hiflatnet_forward.1} parent=11 // pred_check_branch
          %300 = sbr.rel (%p298) target = $region40
        $region39: #{hiflatnet_forward.1} parent=11 // pred_region
          _
        $region40: #{hiflatnet_forward.1} parent=11 // pred_fallthru
          _
        // Predicated region
        $region41: #{hiflatnet_forward.1} parent=11 // pred_check
          %p301 = pneg %p239
        $region42: #{hiflatnet_forward.1} parent=11 // pred_check_branch
          %303 = sbr.rel (%p301) target = $region44
        $region43: #{hiflatnet_forward.1} parent=11 // pred_region
          _
        $region44: #{hiflatnet_forward.1} parent=11 // pred_fallthru
          _
      $region12: #{hiflatnet_forward.1} parent=5 // pred_fallthru
        _
      %p304 = scmp.lt.s32.totalorder %s19, 2
      // Predicated region
      $region45: #{hiflatnet_forward.1} parent=5 // pred_check
        %p305 = pneg %p304
      $region46: #{hiflatnet_forward.1} parent=5 // pred_check_branch
        %307 = sbr.rel (%p305) target = $region48
      $region47: #{hiflatnet_forward.1} parent=5 // pred_region
        // Predicated region
        $region49: #{hiflatnet_forward.1} parent=47 // pred_check
          %p308 = pneg %p39
        $region50: #{hiflatnet_forward.1} parent=47 // pred_check_branch
          %310 = sbr.rel (%p308) target = $region52
        $region51: #{hiflatnet_forward.1} parent=47 // pred_region
          %p311 = scmp.lt.s32.totalorder %s19, 1
          %s312 = scalar_select %p311, %s19, 1
          %s313 = smul.addr %s312, 32
          %s314 = smul.addr %s313, 4
          %s315 = scalar_lea.vmem %s0, %s314
        $region52: #{hiflatnet_forward.1} parent=47 // pred_fallthru
          _
        // Predicated region
        $region53: #{hiflatnet_forward.1} parent=47 // pred_check
          %p316 = pneg %p65
        $region54: #{hiflatnet_forward.1} parent=47 // pred_check_branch
          %318 = sbr.rel (%p316) target = $region56
        $region55: #{hiflatnet_forward.1} parent=47 // pred_region
          %p319 = scmp.lt.s32.totalorder %s19, 1
          %s320 = scalar_select %p319, %s19, 1
          %s321 = smul.addr %s320, 4
          %s322 = scalar_lea.vmem %s1, %s321
        $region56: #{hiflatnet_forward.1} parent=47 // pred_fallthru
          _
      $region48: #{hiflatnet_forward.1} parent=5 // pred_fallthru
        _
      %p323 = scmp.le.s32.totalorder 1, %s19
      %p324 = scmp.lt.s32.totalorder %s19, 3
      %p325 = pnand %p323, %p324
      %p326 = pneg %p325
      // Predicated region
      $region57: #{hiflatnet_forward.1} parent=5 // pred_check
        _
      $region58: #{hiflatnet_forward.1} parent=5 // pred_check_branch
        %328 = sbr.rel (%p325) target = $region60
      $region59: #{hiflatnet_forward.1} parent=5 // pred_region
        %s329 = ssub.s32 %s19, 1
        %p330 = scmp.lt.s32.totalorder %s24, 1
        %s331 = scalar_select %p330, %s24, 1
        %s332 = smul.addr %s331, 32
        %s333 = smul.addr %s332, 4
        %s334 = scalar_lea.vmem %s0, %s333
        %p335 = pneg %p45
        %p336 = pneg %p42
        %p337 = scmp.lt.s32.totalorder %s24, 1
        %s338 = scalar_select %p337, %s24, 1
        %s339 = smul.addr %s338, 4
        %s340 = scalar_lea.vmem %s1, %s339
        %p341 = pneg %p71
        %p342 = pneg %p68
        %p343 = pneg %p92
        %p344 = pneg %p89
        %p345 = pneg %p113
        %p346 = pneg %p110
        %p347 = pneg %p134
        %p348 = pneg %p131
        %p349 = pneg %p155
        %p350 = pneg %p152
        %p351 = pneg %p176
        %p352 = pneg %p173
        %p353 = pneg %p197
        %p354 = pneg %p194
        %p355 = pneg %p218
        %p356 = pneg %p215
        %p357 = pneg %p239
        %p358 = pneg %p236
        %p359 = pneg %p265
        %p360 = pneg %p262
        %s361 = sand.u32 %s252, 1
        %s362 = scalar_lea.sflag [#allocation3], %s361
        %s363 = sand.u32 %s252, 1
        %s364 = scalar_lea.vmem [#allocation2], %s363
        %p365 = scmp.lt.s32.totalorder %s24, 1
        %s366 = scalar_select %p365, %s24, 1
        %s367 = smul.addr %s366, 32
        %s368 = smul.addr %s367, 4
        %s369 = scalar_lea.vmem %s0, %s368
        %p370 = scmp.lt.s32.totalorder %s24, 1
        %s371 = scalar_select %p370, %s24, 1
        %s372 = smul.addr %s371, 4
        %s373 = scalar_lea.vmem %s1, %s372
        %v375 = vld [vmem:[%s369] sm:$0xf]
        %v376 = vld [vmem:[%s369 + $0x4] sm:$0xf]
        %v377 = vld [vmem:[%s369 + $0x8] sm:$0xf]
        %v378 = vld [vmem:[%s369 + $0xc] sm:$0xf]
        %v379 = vld [vmem:[%s369 + $0x10] sm:$0xf]
        %v380 = vld [vmem:[%s369 + $0x14] sm:$0xf]
        %v381 = vld [vmem:[%s369 + $0x18] sm:$0xf]
        %v382 = vld [vmem:[%s369 + $0x1c] sm:$0xf]
        %v383 = vld [vmem:[%s369 + $0x20] sm:$0xf]
        %v384 = vld [vmem:[%s369 + $0x24] sm:$0xf]
        %v385 = vld [vmem:[%s369 + $0x28] sm:$0xf]
        %v386 = vld [vmem:[%s369 + $0x2c] sm:$0xf]
        %v387 = vld [vmem:[%s369 + $0x30] sm:$0xf]
        %v388 = vld [vmem:[%s369 + $0x34] sm:$0xf]
        %v389 = vld [vmem:[%s369 + $0x38] sm:$0xf]
        %v390 = vld [vmem:[%s369 + $0x3c] sm:$0xf]
        %v391 = vld [vmem:[%s369 + $0x40] sm:$0xf]
        %v392 = vld [vmem:[%s369 + $0x44] sm:$0xf]
        %v393 = vld [vmem:[%s369 + $0x48] sm:$0xf]
        %v394 = vld [vmem:[%s369 + $0x4c] sm:$0xf]
        %v395 = vld [vmem:[%s369 + $0x50] sm:$0xf]
        %v396 = vld [vmem:[%s369 + $0x54] sm:$0xf]
        %v397 = vld [vmem:[%s369 + $0x58] sm:$0xf]
        %v398 = vld [vmem:[%s369 + $0x5c] sm:$0xf]
        %v399 = vld [vmem:[%s369 + $0x60] sm:$0xf]
        %v400 = vld [vmem:[%s369 + $0x64] sm:$0xf]
        %v401 = vld [vmem:[%s369 + $0x68] sm:$0xf]
        %v402 = vld [vmem:[%s369 + $0x6c] sm:$0xf]
        %v403 = vld [vmem:[%s369 + $0x70] sm:$0xf]
        %v404 = vld [vmem:[%s369 + $0x74] sm:$0xf]
        %v405 = vld [vmem:[%s369 + $0x78] sm:$0xf]
        %v406 = vld [vmem:[%s369 + $0x7c] sm:$0xf]
        %v407 = vld [vmem:[%s373] sm:$0xf]
        %v408 = vld [vmem:[%s2] sm:$0xf]
        %v409 = vld [vmem:[%s3] sm:$0x1]
        %v411 = vlaneseq
        %v412 = vshrl.u32 %v411, 7
        %v413 = vsub.s32 0, %v412
        %v414 = vrot.slane %v409, %v413
        %v448 = vunpack.c.l.b16 %v375
        %v449 = vunpack.c.l.b16 %v376
        %v450 = vunpack.c.l.b16 %v377
        %v451 = vunpack.c.l.b16 %v378
        %v452 = vunpack.c.l.b16 %v379
        %v453 = vunpack.c.l.b16 %v380
        %v454 = vunpack.c.l.b16 %v381
        %v455 = vunpack.c.l.b16 %v382
        %v456 = vunpack.c.l.b16 %v383
        %v457 = vunpack.c.l.b16 %v384
        %v458 = vunpack.c.l.b16 %v385
        %v459 = vunpack.c.l.b16 %v386
        %v460 = vunpack.c.l.b16 %v387
        %v461 = vunpack.c.l.b16 %v388
        %v462 = vunpack.c.l.b16 %v389
        %v463 = vunpack.c.l.b16 %v390
        %v464 = vunpack.c.l.b16 %v391
        %v465 = vunpack.c.l.b16 %v392
        %v466 = vunpack.c.l.b16 %v393
        %v467 = vunpack.c.l.b16 %v394
        %v468 = vunpack.c.l.b16 %v395
        %v469 = vunpack.c.l.b16 %v396
        %v470 = vunpack.c.l.b16 %v397
        %v471 = vunpack.c.l.b16 %v398
        %v472 = vunpack.c.l.b16 %v399
        %v473 = vunpack.c.l.b16 %v400
        %v474 = vunpack.c.l.b16 %v401
        %v475 = vunpack.c.l.b16 %v402
        %v476 = vunpack.c.l.b16 %v403
        %v477 = vunpack.c.l.b16 %v404
        %v478 = vunpack.c.l.b16 %v405
        %v479 = vunpack.c.l.b16 %v406
        %v480 = vpack.c.b16 %v449, %v448
        %v481 = vpack.c.b16 %v451, %v450
        %v482 = vpack.c.b16 %v453, %v452
        %v483 = vpack.c.b16 %v455, %v454
        %v484 = vpack.c.b16 %v457, %v456
        %v485 = vpack.c.b16 %v459, %v458
        %v486 = vpack.c.b16 %v461, %v460
        %v487 = vpack.c.b16 %v463, %v462
        %v488 = vpack.c.b16 %v465, %v464
        %v489 = vpack.c.b16 %v467, %v466
        %v490 = vpack.c.b16 %v469, %v468
        %v491 = vpack.c.b16 %v471, %v470
        %v492 = vpack.c.b16 %v473, %v472
        %v493 = vpack.c.b16 %v475, %v474
        %v494 = vpack.c.b16 %v477, %v476
        %v495 = vpack.c.b16 %v479, %v478
        %vm496 = vcmask 64512
        %v498 = vsel %vm496, %v480, 0
        %v501 = vsel %vm496, %v481, 0
        %v504 = vsel %vm496, %v482, 0
        %v507 = vsel %vm496, %v483, 0
        %v510 = vsel %vm496, %v484, 0
        %v513 = vsel %vm496, %v485, 0
        %v516 = vsel %vm496, %v486, 0
        %v519 = vsel %vm496, %v487, 0
        %v522 = vsel %vm496, %v488, 0
        %v525 = vsel %vm496, %v489, 0
        %v528 = vsel %vm496, %v490, 0
        %v531 = vsel %vm496, %v491, 0
        %v534 = vsel %vm496, %v492, 0
        %v537 = vsel %vm496, %v493, 0
        %v540 = vsel %vm496, %v494, 0
        %v543 = vsel %vm496, %v495, 0
        %vm545 = vcmask 1043456
        %v547 = vsel %vm545, %v408, 0
        %549 = vmatprep.subr.bf16.mxu0 0
        %550 = vmatpush1.bf16.msra.mxu0 %v547
        %551 = vmatprep.subr.bf16.mxu0 0
        %552 = vmatpush1.bf16.msra.mxu0 0
        %553 = vmatprep.subr.bf16.mxu0 0
        %554 = vmatpush1.bf16.msra.mxu0 0
        %555 = vmatprep.subr.bf16.mxu0 0
        %556 = vmatpush1.bf16.msra.mxu0 0
        %557 = vmatprep.subr.bf16.mxu0 0
        %558 = vmatpush1.bf16.msra.mxu0 0
        %559 = vmatprep.subr.bf16.mxu0 0
        %560 = vmatpush1.bf16.msra.mxu0 0
        %561 = vmatprep.subr.bf16.mxu0 0
        %562 = vmatpush1.bf16.msra.mxu0 0
        %563 = vmatprep.subr.bf16.mxu0 0
        %564 = vmatpush1.bf16.msra.mxu0 0
        %565 = vmatprep.subr.bf16.mxu0 0
        %566 = vmatpush1.bf16.msra.mxu0 0
        %567 = vmatprep.subr.bf16.mxu0 0
        %568 = vmatpush1.bf16.msra.mxu0 0
        %569 = vmatprep.subr.bf16.mxu0 0
        %570 = vmatpush1.bf16.msra.mxu0 0
        %571 = vmatprep.subr.bf16.mxu0 0
        %572 = vmatpush1.bf16.msra.mxu0 0
        %573 = vmatprep.subr.bf16.mxu0 0
        %574 = vmatpush1.bf16.msra.mxu0 0
        %575 = vmatprep.subr.bf16.mxu0 0
        %576 = vmatpush1.bf16.msra.mxu0 0
        %577 = vmatprep.subr.bf16.mxu0 0
        %578 = vmatpush1.bf16.msra.mxu0 0
        %579 = vmatprep.subr.bf16.mxu0 0
        %580 = vmatpush1.bf16.msra.mxu0 0
        %581 = vmatprep.mubr.bf16.mxu0 0
        %582 = vmatmul.mubr.bf16.gmra.mrb[0].mxu0 %v498
        %v583 = vpop.f32.mrb[0].mxu0
        %v584 = vadd.f32 %v414, %v583
        %v585 = vpop.f32.mrb[0].mxu0
        %v586 = vpop.f32.mrb[0].mxu0
        %v587 = vadd.f32 %v414, %v586
        %v588 = vpop.f32.mrb[0].mxu0
        %589 = vmatprep.mubr.bf16.mxu0 0
        %590 = vmatmul.mubr.bf16.gmra.mrb[0].mxu0 %v501
        %v591 = vpop.f32.mrb[0].mxu0
        %v592 = vadd.f32 %v414, %v591
        %v593 = vpop.f32.mrb[0].mxu0
        %v594 = vpop.f32.mrb[0].mxu0
        %v595 = vadd.f32 %v414, %v594
        %v596 = vpop.f32.mrb[0].mxu0
        %597 = vmatprep.mubr.bf16.mxu0 0
        %598 = vmatmul.mubr.bf16.gmra.mrb[0].mxu0 %v504
        %v599 = vpop.f32.mrb[0].mxu0
        %v600 = vadd.f32 %v414, %v599
        %v601 = vpop.f32.mrb[0].mxu0
        %v602 = vpop.f32.mrb[0].mxu0
        %v603 = vadd.f32 %v414, %v602
        %v604 = vpop.f32.mrb[0].mxu0
        %605 = vmatprep.mubr.bf16.mxu0 0
        %606 = vmatmul.mubr.bf16.gmra.mrb[0].mxu0 %v507
        %v607 = vpop.f32.mrb[0].mxu0
        %v608 = vadd.f32 %v414, %v607
        %v609 = vpop.f32.mrb[0].mxu0
        %v610 = vpop.f32.mrb[0].mxu0
        %v611 = vadd.f32 %v414, %v610
        %v612 = vpop.f32.mrb[0].mxu0
        %613 = vmatprep.mubr.bf16.mxu0 0
        %614 = vmatmul.mubr.bf16.gmra.mrb[0].mxu0 %v510
        %v615 = vpop.f32.mrb[0].mxu0
        %v616 = vadd.f32 %v414, %v615
        %v617 = vpop.f32.mrb[0].mxu0
        %v618 = vpop.f32.mrb[0].mxu0
        %v619 = vadd.f32 %v414, %v618
        %v620 = vpop.f32.mrb[0].mxu0
        %621 = vmatprep.mubr.bf16.mxu0 0
        %622 = vmatmul.mubr.bf16.gmra.mrb[0].mxu0 %v513
        %v623 = vpop.f32.mrb[0].mxu0
        %v624 = vadd.f32 %v414, %v623
        %v625 = vpop.f32.mrb[0].mxu0
        %v626 = vpop.f32.mrb[0].mxu0
        %v627 = vadd.f32 %v414, %v626
        %v628 = vpop.f32.mrb[0].mxu0
        %629 = vmatprep.mubr.bf16.mxu0 0
        %630 = vmatmul.mubr.bf16.gmra.mrb[0].mxu0 %v516
        %v631 = vpop.f32.mrb[0].mxu0
        %v632 = vadd.f32 %v414, %v631
        %v633 = vpop.f32.mrb[0].mxu0
        %v634 = vpop.f32.mrb[0].mxu0
        %v635 = vadd.f32 %v414, %v634
        %v636 = vpop.f32.mrb[0].mxu0
        %637 = vmatprep.mubr.bf16.mxu0 0
        %638 = vmatmul.mubr.bf16.gmra.mrb[0].mxu0 %v519
        %v639 = vpop.f32.mrb[0].mxu0
        %v640 = vadd.f32 %v414, %v639
        %v641 = vpop.f32.mrb[0].mxu0
        %v642 = vpop.f32.mrb[0].mxu0
        %v643 = vadd.f32 %v414, %v642
        %v644 = vpop.f32.mrb[0].mxu0
        %645 = vmatprep.mubr.bf16.mxu0 0
        %646 = vmatmul.mubr.bf16.gmra.mrb[0].mxu0 %v522
        %v647 = vpop.f32.mrb[0].mxu0
        %v648 = vadd.f32 %v414, %v647
        %v649 = vpop.f32.mrb[0].mxu0
        %v650 = vpop.f32.mrb[0].mxu0
        %v651 = vadd.f32 %v414, %v650
        %v652 = vpop.f32.mrb[0].mxu0
        %653 = vmatprep.mubr.bf16.mxu0 0
        %654 = vmatmul.mubr.bf16.gmra.mrb[0].mxu0 %v525
        %v655 = vpop.f32.mrb[0].mxu0
        %v656 = vadd.f32 %v414, %v655
        %v657 = vpop.f32.mrb[0].mxu0
        %v658 = vpop.f32.mrb[0].mxu0
        %v659 = vadd.f32 %v414, %v658
        %v660 = vpop.f32.mrb[0].mxu0
        %661 = vmatprep.mubr.bf16.mxu0 0
        %662 = vmatmul.mubr.bf16.gmra.mrb[0].mxu0 %v528
        %v663 = vpop.f32.mrb[0].mxu0
        %v664 = vadd.f32 %v414, %v663
        %v665 = vpop.f32.mrb[0].mxu0
        %v666 = vpop.f32.mrb[0].mxu0
        %v667 = vadd.f32 %v414, %v666
        %v668 = vpop.f32.mrb[0].mxu0
        %669 = vmatprep.mubr.bf16.mxu0 0
        %670 = vmatmul.mubr.bf16.gmra.mrb[0].mxu0 %v531
        %v671 = vpop.f32.mrb[0].mxu0
        %v672 = vadd.f32 %v414, %v671
        %v673 = vpop.f32.mrb[0].mxu0
        %v674 = vpop.f32.mrb[0].mxu0
        %v675 = vadd.f32 %v414, %v674
        %v676 = vpop.f32.mrb[0].mxu0
        %677 = vmatprep.mubr.bf16.mxu0 0
        %678 = vmatmul.mubr.bf16.gmra.mrb[0].mxu0 %v534
        %v679 = vpop.f32.mrb[0].mxu0
        %v680 = vadd.f32 %v414, %v679
        %v681 = vpop.f32.mrb[0].mxu0
        %v682 = vpop.f32.mrb[0].mxu0
        %v683 = vadd.f32 %v414, %v682
        %v684 = vpop.f32.mrb[0].mxu0
        %685 = vmatprep.mubr.bf16.mxu0 0
        %686 = vmatmul.mubr.bf16.gmra.mrb[0].mxu0 %v537
        %v687 = vpop.f32.mrb[0].mxu0
        %v688 = vadd.f32 %v414, %v687
        %v689 = vpop.f32.mrb[0].mxu0
        %v690 = vpop.f32.mrb[0].mxu0
        %v691 = vadd.f32 %v414, %v690
        %v692 = vpop.f32.mrb[0].mxu0
        %693 = vmatprep.mubr.bf16.mxu0 0
        %694 = vmatmul.mubr.bf16.gmra.mrb[0].mxu0 %v540
        %v695 = vpop.f32.mrb[0].mxu0
        %v696 = vadd.f32 %v414, %v695
        %v697 = vpop.f32.mrb[0].mxu0
        %v698 = vpop.f32.mrb[0].mxu0
        %v699 = vadd.f32 %v414, %v698
        %v700 = vpop.f32.mrb[0].mxu0
        %701 = vmatprep.mubr.bf16.mxu0 0
        %702 = vmatmul.mubr.bf16.gmra.mrb[0].mxu0 %v543
        %v703 = vpop.f32.mrb[0].mxu0
        %v704 = vadd.f32 %v414, %v703
        %v705 = vpop.f32.mrb[0].mxu0
        %v706 = vpop.f32.mrb[0].mxu0
        %v707 = vadd.f32 %v414, %v706
        %v708 = vpop.f32.mrb[0].mxu0
        %709 = vdwg.mxu0
        %v710 = vmax.f32 %v584, 0.0
        %v711 = vmax.f32 %v587, 0.0
        %v712 = vmax.f32 %v592, 0.0
        %v713 = vmax.f32 %v595, 0.0
        %v714 = vmax.f32 %v600, 0.0
        %v715 = vmax.f32 %v603, 0.0
        %v716 = vmax.f32 %v608, 0.0
        %v717 = vmax.f32 %v611, 0.0
        %v718 = vmax.f32 %v616, 0.0
        %v719 = vmax.f32 %v619, 0.0
        %v720 = vmax.f32 %v624, 0.0
        %v721 = vmax.f32 %v627, 0.0
        %v722 = vmax.f32 %v632, 0.0
        %v723 = vmax.f32 %v635, 0.0
        %v724 = vmax.f32 %v640, 0.0
        %v725 = vmax.f32 %v643, 0.0
        %v726 = vmax.f32 %v648, 0.0
        %v727 = vmax.f32 %v651, 0.0
        %v728 = vmax.f32 %v656, 0.0
        %v729 = vmax.f32 %v659, 0.0
        %v730 = vmax.f32 %v664, 0.0
        %v731 = vmax.f32 %v667, 0.0
        %v732 = vmax.f32 %v672, 0.0
        %v733 = vmax.f32 %v675, 0.0
        %v734 = vmax.f32 %v680, 0.0
        %v735 = vmax.f32 %v683, 0.0
        %v736 = vmax.f32 %v688, 0.0
        %v737 = vmax.f32 %v691, 0.0
        %v738 = vmax.f32 %v696, 0.0
        %v739 = vmax.f32 %v699, 0.0
        %v740 = vmax.f32 %v704, 0.0
        %v741 = vmax.f32 %v707, 0.0
        %v742 = vpack.c.bf16 %v711, %v710
        %v743 = vpack.c.bf16 %v713, %v712
        %v744 = vpack.c.bf16 %v715, %v714
        %v745 = vpack.c.bf16 %v717, %v716
        %v746 = vpack.c.bf16 %v719, %v718
        %v747 = vpack.c.bf16 %v721, %v720
        %v748 = vpack.c.bf16 %v723, %v722
        %v749 = vpack.c.bf16 %v725, %v724
        %v750 = vpack.c.bf16 %v727, %v726
        %v751 = vpack.c.bf16 %v729, %v728
        %v752 = vpack.c.bf16 %v731, %v730
        %v753 = vpack.c.bf16 %v733, %v732
        %v754 = vpack.c.bf16 %v735, %v734
        %v755 = vpack.c.bf16 %v737, %v736
        %v756 = vpack.c.bf16 %v739, %v738
        %v757 = vpack.c.bf16 %v741, %v740
        %v758 = vld [vmem:[%s4] sm:$0xf]
        %v759 = vld [vmem:[%s4 + $0x4] sm:$0xf]
        %v760 = vld [vmem:[%s4 + $0x8] sm:$0xf]
        %v761 = vld [vmem:[%s4 + $0xc] sm:$0xf]
        %v762 = vld [vmem:[%s5] sm:$0x1]
        %v764 = vlaneseq
        %v765 = vshrl.u32 %v764, 7
        %v766 = vsub.s32 0, %v765
        %v767 = vrot.slane %v762, %v766
        %v773 = vunpack.c.l.b16 %v758
        %v774 = vunpack.c.l.b16 %v759
        %v775 = vunpack.c.l.b16 %v760
        %v776 = vunpack.c.l.b16 %v761
        %v777 = vpack.c.b16 %v774, %v773
        %v778 = vpack.c.b16 %v776, %v775
        %vm781 = vcmask 261120
        %v783 = vsel %vm781, %v742, 0
        %v786 = vsel %vm781, %v743, 0
        %v789 = vsel %vm781, %v744, 0
        %v792 = vsel %vm781, %v745, 0
        %v795 = vsel %vm781, %v746, 0
        %v798 = vsel %vm781, %v747, 0
        %v801 = vsel %vm781, %v748, 0
        %v804 = vsel %vm781, %v749, 0
        %v807 = vsel %vm781, %v750, 0
        %v810 = vsel %vm781, %v751, 0
        %v813 = vsel %vm781, %v752, 0
        %v816 = vsel %vm781, %v753, 0
        %v819 = vsel %vm781, %v754, 0
        %v822 = vsel %vm781, %v755, 0
        %v825 = vsel %vm781, %v756, 0
        %v828 = vsel %vm781, %v757, 0
        %830 = vmatprep.subr.bf16.mxu0 0
        %831 = vmatpush1.bf16.msra.mxu0 %v777
        %832 = vmatprep.subr.bf16.mxu0 0
        %833 = vmatpush1.bf16.msra.mxu0 %v778
        %834 = vmatprep.subr.bf16.mxu0 0
        %835 = vmatpush1.bf16.msra.mxu0 0
        %836 = vmatprep.subr.bf16.mxu0 0
        %837 = vmatpush1.bf16.msra.mxu0 0
        %838 = vmatprep.subr.bf16.mxu0 0
        %839 = vmatpush1.bf16.msra.mxu0 0
        %840 = vmatprep.subr.bf16.mxu0 0
        %841 = vmatpush1.bf16.msra.mxu0 0
        %842 = vmatprep.subr.bf16.mxu0 0
        %843 = vmatpush1.bf16.msra.mxu0 0
        %844 = vmatprep.subr.bf16.mxu0 0
        %845 = vmatpush1.bf16.msra.mxu0 0
        %846 = vmatprep.subr.bf16.mxu0 0
        %847 = vmatpush1.bf16.msra.mxu0 0
        %848 = vmatprep.subr.bf16.mxu0 0
        %849 = vmatpush1.bf16.msra.mxu0 0
        %850 = vmatprep.subr.bf16.mxu0 0
        %851 = vmatpush1.bf16.msra.mxu0 0
        %852 = vmatprep.subr.bf16.mxu0 0
        %853 = vmatpush1.bf16.msra.mxu0 0
        %854 = vmatprep.subr.bf16.mxu0 0
        %855 = vmatpush1.bf16.msra.mxu0 0
        %856 = vmatprep.subr.bf16.mxu0 0
        %857 = vmatpush1.bf16.msra.mxu0 0
        %858 = vmatprep.subr.bf16.mxu0 0
        %859 = vmatpush1.bf16.msra.mxu0 0
        %860 = vmatprep.subr.bf16.mxu0 0
        %861 = vmatpush1.bf16.msra.mxu0 0
        %862 = vmatprep.mubr.bf16.mxu0 0
        %863 = vmatmul.mubr.bf16.gmra.mrb[0].mxu0 %v783
        %v864 = vpop.f32.mrb[0].mxu0
        %v865 = vadd.f32 %v767, %v864
        %v866 = vpop.f32.mrb[0].mxu0
        %v867 = vpop.f32.mrb[0].mxu0
        %v868 = vadd.f32 %v767, %v867
        %v869 = vpop.f32.mrb[0].mxu0
        %870 = vmatprep.mubr.bf16.mxu0 0
        %871 = vmatmul.mubr.bf16.gmra.mrb[0].mxu0 %v786
        %v872 = vpop.f32.mrb[0].mxu0
        %v873 = vadd.f32 %v767, %v872
        %v874 = vpop.f32.mrb[0].mxu0
        %v875 = vpop.f32.mrb[0].mxu0
        %v876 = vadd.f32 %v767, %v875
        %v877 = vpop.f32.mrb[0].mxu0
        %878 = vmatprep.mubr.bf16.mxu0 0
        %879 = vmatmul.mubr.bf16.gmra.mrb[0].mxu0 %v789
        %v880 = vpop.f32.mrb[0].mxu0
        %v881 = vadd.f32 %v767, %v880
        %v882 = vpop.f32.mrb[0].mxu0
        %v883 = vpop.f32.mrb[0].mxu0
        %v884 = vadd.f32 %v767, %v883
        %v885 = vpop.f32.mrb[0].mxu0
        %886 = vmatprep.mubr.bf16.mxu0 0
        %887 = vmatmul.mubr.bf16.gmra.mrb[0].mxu0 %v792
        %v888 = vpop.f32.mrb[0].mxu0
        %v889 = vadd.f32 %v767, %v888
        %v890 = vpop.f32.mrb[0].mxu0
        %v891 = vpop.f32.mrb[0].mxu0
        %v892 = vadd.f32 %v767, %v891
        %v893 = vpop.f32.mrb[0].mxu0
        %894 = vmatprep.mubr.bf16.mxu0 0
        %895 = vmatmul.mubr.bf16.gmra.mrb[0].mxu0 %v795
        %v896 = vpop.f32.mrb[0].mxu0
        %v897 = vadd.f32 %v767, %v896
        %v898 = vpop.f32.mrb[0].mxu0
        %v899 = vpop.f32.mrb[0].mxu0
        %v900 = vadd.f32 %v767, %v899
        %v901 = vpop.f32.mrb[0].mxu0
        %902 = vmatprep.mubr.bf16.mxu0 0
        %903 = vmatmul.mubr.bf16.gmra.mrb[0].mxu0 %v798
        %v904 = vpop.f32.mrb[0].mxu0
        %v905 = vadd.f32 %v767, %v904
        %v906 = vpop.f32.mrb[0].mxu0
        %v907 = vpop.f32.mrb[0].mxu0
        %v908 = vadd.f32 %v767, %v907
        %v909 = vpop.f32.mrb[0].mxu0
        %910 = vmatprep.mubr.bf16.mxu0 0
        %911 = vmatmul.mubr.bf16.gmra.mrb[0].mxu0 %v801
        %v912 = vpop.f32.mrb[0].mxu0
        %v913 = vadd.f32 %v767, %v912
        %v914 = vpop.f32.mrb[0].mxu0
        %v915 = vpop.f32.mrb[0].mxu0
        %v916 = vadd.f32 %v767, %v915
        %v917 = vpop.f32.mrb[0].mxu0
        %918 = vmatprep.mubr.bf16.mxu0 0
        %919 = vmatmul.mubr.bf16.gmra.mrb[0].mxu0 %v804
        %v920 = vpop.f32.mrb[0].mxu0
        %v921 = vadd.f32 %v767, %v920
        %v922 = vpop.f32.mrb[0].mxu0
        %v923 = vpop.f32.mrb[0].mxu0
        %v924 = vadd.f32 %v767, %v923
        %v925 = vpop.f32.mrb[0].mxu0
        %926 = vmatprep.mubr.bf16.mxu0 0
        %927 = vmatmul.mubr.bf16.gmra.mrb[0].mxu0 %v807
        %v928 = vpop.f32.mrb[0].mxu0
        %v929 = vadd.f32 %v767, %v928
        %v930 = vpop.f32.mrb[0].mxu0
        %v931 = vpop.f32.mrb[0].mxu0
        %v932 = vadd.f32 %v767, %v931
        %v933 = vpop.f32.mrb[0].mxu0
        %934 = vmatprep.mubr.bf16.mxu0 0
        %935 = vmatmul.mubr.bf16.gmra.mrb[0].mxu0 %v810
        %v936 = vpop.f32.mrb[0].mxu0
        %v937 = vadd.f32 %v767, %v936
        %v938 = vpop.f32.mrb[0].mxu0
        %v939 = vpop.f32.mrb[0].mxu0
        %v940 = vadd.f32 %v767, %v939
        %v941 = vpop.f32.mrb[0].mxu0
        %942 = vmatprep.mubr.bf16.mxu0 0
        %943 = vmatmul.mubr.bf16.gmra.mrb[0].mxu0 %v813
        %v944 = vpop.f32.mrb[0].mxu0
        %v945 = vadd.f32 %v767, %v944
        %v946 = vpop.f32.mrb[0].mxu0
        %v947 = vpop.f32.mrb[0].mxu0
        %v948 = vadd.f32 %v767, %v947
        %v949 = vpop.f32.mrb[0].mxu0
        %950 = vmatprep.mubr.bf16.mxu0 0
        %951 = vmatmul.mubr.bf16.gmra.mrb[0].mxu0 %v816
        %v952 = vpop.f32.mrb[0].mxu0
        %v953 = vadd.f32 %v767, %v952
        %v954 = vpop.f32.mrb[0].mxu0
        %v955 = vpop.f32.mrb[0].mxu0
        %v956 = vadd.f32 %v767, %v955
        %v957 = vpop.f32.mrb[0].mxu0
        %958 = vmatprep.mubr.bf16.mxu0 0
        %959 = vmatmul.mubr.bf16.gmra.mrb[0].mxu0 %v819
        %v960 = vpop.f32.mrb[0].mxu0
        %v961 = vadd.f32 %v767, %v960
        %v962 = vpop.f32.mrb[0].mxu0
        %v963 = vpop.f32.mrb[0].mxu0
        %v964 = vadd.f32 %v767, %v963
        %v965 = vpop.f32.mrb[0].mxu0
        %966 = vmatprep.mubr.bf16.mxu0 0
        %967 = vmatmul.mubr.bf16.gmra.mrb[0].mxu0 %v822
        %v968 = vpop.f32.mrb[0].mxu0
        %v969 = vadd.f32 %v767, %v968
        %v970 = vpop.f32.mrb[0].mxu0
        %v971 = vpop.f32.mrb[0].mxu0
        %v972 = vadd.f32 %v767, %v971
        %v973 = vpop.f32.mrb[0].mxu0
        %974 = vmatprep.mubr.bf16.mxu0 0
        %975 = vmatmul.mubr.bf16.gmra.mrb[0].mxu0 %v825
        %v976 = vpop.f32.mrb[0].mxu0
        %v977 = vadd.f32 %v767, %v976
        %v978 = vpop.f32.mrb[0].mxu0
        %v979 = vpop.f32.mrb[0].mxu0
        %v980 = vadd.f32 %v767, %v979
        %v981 = vpop.f32.mrb[0].mxu0
        %982 = vmatprep.mubr.bf16.mxu0 0
        %983 = vmatmul.mubr.bf16.gmra.mrb[0].mxu0 %v828
        %v984 = vpop.f32.mrb[0].mxu0
        %v985 = vadd.f32 %v767, %v984
        %v986 = vpop.f32.mrb[0].mxu0
        %v987 = vpop.f32.mrb[0].mxu0
        %v988 = vadd.f32 %v767, %v987
        %v989 = vpop.f32.mrb[0].mxu0
        %990 = vdwg.mxu0
        %v991 = vxor.u32 %v865, 2147483648
        %v992 = vxor.u32 %v868, 2147483648
        %v993 = vxor.u32 %v873, 2147483648
        %v994 = vxor.u32 %v876, 2147483648
        %v995 = vxor.u32 %v881, 2147483648
        %v996 = vxor.u32 %v884, 2147483648
        %v997 = vxor.u32 %v889, 2147483648
        %v998 = vxor.u32 %v892, 2147483648
        %v999 = vxor.u32 %v897, 2147483648
        %v1000 = vxor.u32 %v900, 2147483648
        %v1001 = vxor.u32 %v905, 2147483648
        %v1002 = vxor.u32 %v908, 2147483648
        %v1003 = vxor.u32 %v913, 2147483648
        %v1004 = vxor.u32 %v916, 2147483648
        %v1005 = vxor.u32 %v921, 2147483648
        %v1006 = vxor.u32 %v924, 2147483648
        %v1007 = vxor.u32 %v929, 2147483648
        %v1008 = vxor.u32 %v932, 2147483648
        %v1009 = vxor.u32 %v937, 2147483648
        %v1010 = vxor.u32 %v940, 2147483648
        %v1011 = vxor.u32 %v945, 2147483648
        %v1012 = vxor.u32 %v948, 2147483648
        %v1013 = vxor.u32 %v953, 2147483648
        %v1014 = vxor.u32 %v956, 2147483648
        %v1015 = vxor.u32 %v961, 2147483648
        %v1016 = vxor.u32 %v964, 2147483648
        %v1017 = vxor.u32 %v969, 2147483648
        %v1018 = vxor.u32 %v972, 2147483648
        %v1019 = vxor.u32 %v977, 2147483648
        %v1020 = vxor.u32 %v980, 2147483648
        %v1021 = vxor.u32 %v985, 2147483648
        %v1022 = vxor.u32 %v988, 2147483648
        %v1023 = vmul.f32 %v991, 1.442695
        %v1024 = vpow.pop %v1023
        %v1025 = vmul.f32 %v992, 1.442695
        %v1026 = vpow.pop %v1025
        %v1027 = vmul.f32 %v993, 1.442695
        %v1028 = vpow.pop %v1027
        %v1029 = vmul.f32 %v994, 1.442695
        %v1030 = vpow.pop %v1029
        %v1031 = vmul.f32 %v995, 1.442695
        %v1032 = vpow.pop %v1031
        %v1033 = vmul.f32 %v996, 1.442695
        %v1034 = vpow.pop %v1033
        %v1035 = vmul.f32 %v997, 1.442695
        %v1036 = vpow.pop %v1035
        %v1037 = vmul.f32 %v998, 1.442695
        %v1038 = vpow.pop %v1037
        %v1039 = vmul.f32 %v999, 1.442695
        %v1040 = vpow.pop %v1039
        %v1041 = vmul.f32 %v1000, 1.442695
        %v1042 = vpow.pop %v1041
        %v1043 = vmul.f32 %v1001, 1.442695
        %v1044 = vpow.pop %v1043
        %v1045 = vmul.f32 %v1002, 1.442695
        %v1046 = vpow.pop %v1045
        %v1047 = vmul.f32 %v1003, 1.442695
        %v1048 = vpow.pop %v1047
        %v1049 = vmul.f32 %v1004, 1.442695
        %v1050 = vpow.pop %v1049
        %v1051 = vmul.f32 %v1005, 1.442695
        %v1052 = vpow.pop %v1051
        %v1053 = vmul.f32 %v1006, 1.442695
        %v1054 = vpow.pop %v1053
        %v1055 = vmul.f32 %v1007, 1.442695
        %v1056 = vpow.pop %v1055
        %v1057 = vmul.f32 %v1008, 1.442695
        %v1058 = vpow.pop %v1057
        %v1059 = vmul.f32 %v1009, 1.442695
        %v1060 = vpow.pop %v1059
        %v1061 = vmul.f32 %v1010, 1.442695
        %v1062 = vpow.pop %v1061
        %v1063 = vmul.f32 %v1011, 1.442695
        %v1064 = vpow.pop %v1063
        %v1065 = vmul.f32 %v1012, 1.442695
        %v1066 = vpow.pop %v1065
        %v1067 = vmul.f32 %v1013, 1.442695
        %v1068 = vpow.pop %v1067
        %v1069 = vmul.f32 %v1014, 1.442695
        %v1070 = vpow.pop %v1069
        %v1071 = vmul.f32 %v1015, 1.442695
        %v1072 = vpow.pop %v1071
        %v1073 = vmul.f32 %v1016, 1.442695
        %v1074 = vpow.pop %v1073
        %v1075 = vmul.f32 %v1017, 1.442695
        %v1076 = vpow.pop %v1075
        %v1077 = vmul.f32 %v1018, 1.442695
        %v1078 = vpow.pop %v1077
        %v1079 = vmul.f32 %v1019, 1.442695
        %v1080 = vpow.pop %v1079
        %v1081 = vmul.f32 %v1020, 1.442695
        %v1082 = vpow.pop %v1081
        %v1083 = vmul.f32 %v1021, 1.442695
        %v1084 = vpow.pop %v1083
        %v1085 = vmul.f32 %v1022, 1.442695
        %v1086 = vpow.pop %v1085
        %v1087 = vadd.f32 %v1024, 1.0
        %v1088 = vadd.f32 %v1026, 1.0
        %v1089 = vadd.f32 %v1028, 1.0
        %v1090 = vadd.f32 %v1030, 1.0
        %v1091 = vadd.f32 %v1032, 1.0
        %v1092 = vadd.f32 %v1034, 1.0
        %v1093 = vadd.f32 %v1036, 1.0
        %v1094 = vadd.f32 %v1038, 1.0
        %v1095 = vadd.f32 %v1040, 1.0
        %v1096 = vadd.f32 %v1042, 1.0
        %v1097 = vadd.f32 %v1044, 1.0
        %v1098 = vadd.f32 %v1046, 1.0
        %v1099 = vadd.f32 %v1048, 1.0
        %v1100 = vadd.f32 %v1050, 1.0
        %v1101 = vadd.f32 %v1052, 1.0
        %v1102 = vadd.f32 %v1054, 1.0
        %v1103 = vadd.f32 %v1056, 1.0
        %v1104 = vadd.f32 %v1058, 1.0
        %v1105 = vadd.f32 %v1060, 1.0
        %v1106 = vadd.f32 %v1062, 1.0
        %v1107 = vadd.f32 %v1064, 1.0
        %v1108 = vadd.f32 %v1066, 1.0
        %v1109 = vadd.f32 %v1068, 1.0
        %v1110 = vadd.f32 %v1070, 1.0
        %v1111 = vadd.f32 %v1072, 1.0
        %v1112 = vadd.f32 %v1074, 1.0
        %v1113 = vadd.f32 %v1076, 1.0
        %v1114 = vadd.f32 %v1078, 1.0
        %v1115 = vadd.f32 %v1080, 1.0
        %v1116 = vadd.f32 %v1082, 1.0
        %v1117 = vadd.f32 %v1084, 1.0
        %v1118 = vadd.f32 %v1086, 1.0
        %v1119 = vrcp.pop %v1087
        %v1120 = vmul.f32 1.0, %v1119
        %v1121 = vrcp.pop %v1088
        %v1122 = vmul.f32 1.0, %v1121
        %v1123 = vrcp.pop %v1089
        %v1124 = vmul.f32 1.0, %v1123
        %v1125 = vrcp.pop %v1090
        %v1126 = vmul.f32 1.0, %v1125
        %v1127 = vrcp.pop %v1091
        %v1128 = vmul.f32 1.0, %v1127
        %v1129 = vrcp.pop %v1092
        %v1130 = vmul.f32 1.0, %v1129
        %v1131 = vrcp.pop %v1093
        %v1132 = vmul.f32 1.0, %v1131
        %v1133 = vrcp.pop %v1094
        %v1134 = vmul.f32 1.0, %v1133
        %v1135 = vrcp.pop %v1095
        %v1136 = vmul.f32 1.0, %v1135
        %v1137 = vrcp.pop %v1096
        %v1138 = vmul.f32 1.0, %v1137
        %v1139 = vrcp.pop %v1097
        %v1140 = vmul.f32 1.0, %v1139
        %v1141 = vrcp.pop %v1098
        %v1142 = vmul.f32 1.0, %v1141
        %v1143 = vrcp.pop %v1099
        %v1144 = vmul.f32 1.0, %v1143
        %v1145 = vrcp.pop %v1100
        %v1146 = vmul.f32 1.0, %v1145
        %v1147 = vrcp.pop %v1101
        %v1148 = vmul.f32 1.0, %v1147
        %v1149 = vrcp.pop %v1102
        %v1150 = vmul.f32 1.0, %v1149
        %v1151 = vrcp.pop %v1103
        %v1152 = vmul.f32 1.0, %v1151
        %v1153 = vrcp.pop %v1104
        %v1154 = vmul.f32 1.0, %v1153
        %v1155 = vrcp.pop %v1105
        %v1156 = vmul.f32 1.0, %v1155
        %v1157 = vrcp.pop %v1106
        %v1158 = vmul.f32 1.0, %v1157
        %v1159 = vrcp.pop %v1107
        %v1160 = vmul.f32 1.0, %v1159
        %v1161 = vrcp.pop %v1108
        %v1162 = vmul.f32 1.0, %v1161
        %v1163 = vrcp.pop %v1109
        %v1164 = vmul.f32 1.0, %v1163
        %v1165 = vrcp.pop %v1110
        %v1166 = vmul.f32 1.0, %v1165
        %v1167 = vrcp.pop %v1111
        %v1168 = vmul.f32 1.0, %v1167
        %v1169 = vrcp.pop %v1112
        %v1170 = vmul.f32 1.0, %v1169
        %v1171 = vrcp.pop %v1113
        %v1172 = vmul.f32 1.0, %v1171
        %v1173 = vrcp.pop %v1114
        %v1174 = vmul.f32 1.0, %v1173
        %v1175 = vrcp.pop %v1115
        %v1176 = vmul.f32 1.0, %v1175
        %v1177 = vrcp.pop %v1116
        %v1178 = vmul.f32 1.0, %v1177
        %v1179 = vrcp.pop %v1117
        %v1180 = vmul.f32 1.0, %v1179
        %v1181 = vrcp.pop %v1118
        %v1182 = vmul.f32 1.0, %v1181
        %vm1183 = vcmask 1048064
        %1184 = vrot.lane.b32.xlu0 %v1120, 64
        %v1185 = vpop.permute.xlu0 %1184
        %v1186 = vsel %vm1183, %v1185, %v1120
        %1187 = vrot.lane.b32.xlu0 %v1122, 64
        %v1188 = vpop.permute.xlu0 %1187
        %v1189 = vsel %vm1183, %v1188, %v1122
        %1190 = vrot.lane.b32.xlu0 %v1124, 64
        %v1191 = vpop.permute.xlu0 %1190
        %v1192 = vsel %vm1183, %v1191, %v1124
        %1193 = vrot.lane.b32.xlu0 %v1126, 64
        %v1194 = vpop.permute.xlu0 %1193
        %v1195 = vsel %vm1183, %v1194, %v1126
        %1196 = vrot.lane.b32.xlu0 %v1128, 64
        %v1197 = vpop.permute.xlu0 %1196
        %v1198 = vsel %vm1183, %v1197, %v1128
        %1199 = vrot.lane.b32.xlu0 %v1130, 64
        %v1200 = vpop.permute.xlu0 %1199
        %v1201 = vsel %vm1183, %v1200, %v1130
        %1202 = vrot.lane.b32.xlu0 %v1132, 64
        %v1203 = vpop.permute.xlu0 %1202
        %v1204 = vsel %vm1183, %v1203, %v1132
        %1205 = vrot.lane.b32.xlu0 %v1134, 64
        %v1206 = vpop.permute.xlu0 %1205
        %v1207 = vsel %vm1183, %v1206, %v1134
        %1208 = vrot.lane.b32.xlu0 %v1136, 64
        %v1209 = vpop.permute.xlu0 %1208
        %v1210 = vsel %vm1183, %v1209, %v1136
        %1211 = vrot.lane.b32.xlu0 %v1138, 64
        %v1212 = vpop.permute.xlu0 %1211
        %v1213 = vsel %vm1183, %v1212, %v1138
        %1214 = vrot.lane.b32.xlu0 %v1140, 64
        %v1215 = vpop.permute.xlu0 %1214
        %v1216 = vsel %vm1183, %v1215, %v1140
        %1217 = vrot.lane.b32.xlu0 %v1142, 64
        %v1218 = vpop.permute.xlu0 %1217
        %v1219 = vsel %vm1183, %v1218, %v1142
        %1220 = vrot.lane.b32.xlu0 %v1144, 64
        %v1221 = vpop.permute.xlu0 %1220
        %v1222 = vsel %vm1183, %v1221, %v1144
        %1223 = vrot.lane.b32.xlu0 %v1146, 64
        %v1224 = vpop.permute.xlu0 %1223
        %v1225 = vsel %vm1183, %v1224, %v1146
        %1226 = vrot.lane.b32.xlu0 %v1148, 64
        %v1227 = vpop.permute.xlu0 %1226
        %v1228 = vsel %vm1183, %v1227, %v1148
        %1229 = vrot.lane.b32.xlu0 %v1150, 64
        %v1230 = vpop.permute.xlu0 %1229
        %v1231 = vsel %vm1183, %v1230, %v1150
        %1232 = vrot.lane.b32.xlu0 %v1152, 64
        %v1233 = vpop.permute.xlu0 %1232
        %v1234 = vsel %vm1183, %v1233, %v1152
        %1235 = vrot.lane.b32.xlu0 %v1154, 64
        %v1236 = vpop.permute.xlu0 %1235
        %v1237 = vsel %vm1183, %v1236, %v1154
        %1238 = vrot.lane.b32.xlu0 %v1156, 64
        %v1239 = vpop.permute.xlu0 %1238
        %v1240 = vsel %vm1183, %v1239, %v1156
        %1241 = vrot.lane.b32.xlu0 %v1158, 64
        %v1242 = vpop.permute.xlu0 %1241
        %v1243 = vsel %vm1183, %v1242, %v1158
        %1244 = vrot.lane.b32.xlu0 %v1160, 64
        %v1245 = vpop.permute.xlu0 %1244
        %v1246 = vsel %vm1183, %v1245, %v1160
        %1247 = vrot.lane.b32.xlu0 %v1162, 64
        %v1248 = vpop.permute.xlu0 %1247
        %v1249 = vsel %vm1183, %v1248, %v1162
        %1250 = vrot.lane.b32.xlu0 %v1164, 64
        %v1251 = vpop.permute.xlu0 %1250
        %v1252 = vsel %vm1183, %v1251, %v1164
        %1253 = vrot.lane.b32.xlu0 %v1166, 64
        %v1254 = vpop.permute.xlu0 %1253
        %v1255 = vsel %vm1183, %v1254, %v1166
        %1256 = vrot.lane.b32.xlu0 %v1168, 64
        %v1257 = vpop.permute.xlu0 %1256
        %v1258 = vsel %vm1183, %v1257, %v1168
        %1259 = vrot.lane.b32.xlu0 %v1170, 64
        %v1260 = vpop.permute.xlu0 %1259
        %v1261 = vsel %vm1183, %v1260, %v1170
        %1262 = vrot.lane.b32.xlu0 %v1172, 64
        %v1263 = vpop.permute.xlu0 %1262
        %v1264 = vsel %vm1183, %v1263, %v1172
        %1265 = vrot.lane.b32.xlu0 %v1174, 64
        %v1266 = vpop.permute.xlu0 %1265
        %v1267 = vsel %vm1183, %v1266, %v1174
        %1268 = vrot.lane.b32.xlu0 %v1176, 64
        %v1269 = vpop.permute.xlu0 %1268
        %v1270 = vsel %vm1183, %v1269, %v1176
        %1271 = vrot.lane.b32.xlu0 %v1178, 64
        %v1272 = vpop.permute.xlu0 %1271
        %v1273 = vsel %vm1183, %v1272, %v1178
        %1274 = vrot.lane.b32.xlu0 %v1180, 64
        %v1275 = vpop.permute.xlu0 %1274
        %v1276 = vsel %vm1183, %v1275, %v1180
        %1277 = vrot.lane.b32.xlu0 %v1182, 64
        %v1278 = vpop.permute.xlu0 %1277
        %v1279 = vsel %vm1183, %v1278, %v1182
        %1280 = vrot.lane.b32.xlu0 %v1186, 64
        %v1281 = vpop.permute.xlu0 %1280
        %1282 = vrot.lane.b32.xlu0 %v1189, 64
        %v1283 = vpop.permute.xlu0 %1282
        %1284 = vrot.lane.b32.xlu0 %v1192, 64
        %v1285 = vpop.permute.xlu0 %1284
        %1286 = vrot.lane.b32.xlu0 %v1195, 64
        %v1287 = vpop.permute.xlu0 %1286
        %1288 = vrot.lane.b32.xlu0 %v1198, 64
        %v1289 = vpop.permute.xlu0 %1288
        %1290 = vrot.lane.b32.xlu0 %v1201, 64
        %v1291 = vpop.permute.xlu0 %1290
        %1292 = vrot.lane.b32.xlu0 %v1204, 64
        %v1293 = vpop.permute.xlu0 %1292
        %1294 = vrot.lane.b32.xlu0 %v1207, 64
        %v1295 = vpop.permute.xlu0 %1294
        %1296 = vrot.lane.b32.xlu0 %v1210, 64
        %v1297 = vpop.permute.xlu0 %1296
        %1298 = vrot.lane.b32.xlu0 %v1213, 64
        %v1299 = vpop.permute.xlu0 %1298
        %1300 = vrot.lane.b32.xlu0 %v1216, 64
        %v1301 = vpop.permute.xlu0 %1300
        %1302 = vrot.lane.b32.xlu0 %v1219, 64
        %v1303 = vpop.permute.xlu0 %1302
        %1304 = vrot.lane.b32.xlu0 %v1222, 64
        %v1305 = vpop.permute.xlu0 %1304
        %1306 = vrot.lane.b32.xlu0 %v1225, 64
        %v1307 = vpop.permute.xlu0 %1306
        %1308 = vrot.lane.b32.xlu0 %v1228, 64
        %v1309 = vpop.permute.xlu0 %1308
        %1310 = vrot.lane.b32.xlu0 %v1231, 64
        %v1311 = vpop.permute.xlu0 %1310
        %1312 = vrot.lane.b32.xlu0 %v1234, 64
        %v1313 = vpop.permute.xlu0 %1312
        %1314 = vrot.lane.b32.xlu0 %v1237, 64
        %v1315 = vpop.permute.xlu0 %1314
        %1316 = vrot.lane.b32.xlu0 %v1240, 64
        %v1317 = vpop.permute.xlu0 %1316
        %1318 = vrot.lane.b32.xlu0 %v1243, 64
        %v1319 = vpop.permute.xlu0 %1318
        %1320 = vrot.lane.b32.xlu0 %v1246, 64
        %v1321 = vpop.permute.xlu0 %1320
        %1322 = vrot.lane.b32.xlu0 %v1249, 64
        %v1323 = vpop.permute.xlu0 %1322
        %1324 = vrot.lane.b32.xlu0 %v1252, 64
        %v1325 = vpop.permute.xlu0 %1324
        %1326 = vrot.lane.b32.xlu0 %v1255, 64
        %v1327 = vpop.permute.xlu0 %1326
        %1328 = vrot.lane.b32.xlu0 %v1258, 64
        %v1329 = vpop.permute.xlu0 %1328
        %1330 = vrot.lane.b32.xlu0 %v1261, 64
        %v1331 = vpop.permute.xlu0 %1330
        %1332 = vrot.lane.b32.xlu0 %v1264, 64
        %v1333 = vpop.permute.xlu0 %1332
        %1334 = vrot.lane.b32.xlu0 %v1267, 64
        %v1335 = vpop.permute.xlu0 %1334
        %1336 = vrot.lane.b32.xlu0 %v1270, 64
        %v1337 = vpop.permute.xlu0 %1336
        %1338 = vrot.lane.b32.xlu0 %v1273, 64
        %v1339 = vpop.permute.xlu0 %1338
        %1340 = vrot.lane.b32.xlu0 %v1276, 64
        %v1341 = vpop.permute.xlu0 %1340
        %1342 = vrot.lane.b32.xlu0 %v1279, 64
        %v1343 = vpop.permute.xlu0 %1342
        %v1344 = vsel %vm1183, %v1281, %v1120
        %v1345 = vsel %vm1183, %v1283, %v1122
        %v1346 = vsel %vm1183, %v1285, %v1124
        %v1347 = vsel %vm1183, %v1287, %v1126
        %v1348 = vsel %vm1183, %v1289, %v1128
        %v1349 = vsel %vm1183, %v1291, %v1130
        %v1350 = vsel %vm1183, %v1293, %v1132
        %v1351 = vsel %vm1183, %v1295, %v1134
        %v1352 = vsel %vm1183, %v1297, %v1136
        %v1353 = vsel %vm1183, %v1299, %v1138
        %v1354 = vsel %vm1183, %v1301, %v1140
        %v1355 = vsel %vm1183, %v1303, %v1142
        %v1356 = vsel %vm1183, %v1305, %v1144
        %v1357 = vsel %vm1183, %v1307, %v1146
        %v1358 = vsel %vm1183, %v1309, %v1148
        %v1359 = vsel %vm1183, %v1311, %v1150
        %v1360 = vsel %vm1183, %v1313, %v1152
        %v1361 = vsel %vm1183, %v1315, %v1154
        %v1362 = vsel %vm1183, %v1317, %v1156
        %v1363 = vsel %vm1183, %v1319, %v1158
        %v1364 = vsel %vm1183, %v1321, %v1160
        %v1365 = vsel %vm1183, %v1323, %v1162
        %v1366 = vsel %vm1183, %v1325, %v1164
        %v1367 = vsel %vm1183, %v1327, %v1166
        %v1368 = vsel %vm1183, %v1329, %v1168
        %v1369 = vsel %vm1183, %v1331, %v1170
        %v1370 = vsel %vm1183, %v1333, %v1172
        %v1371 = vsel %vm1183, %v1335, %v1174
        %v1372 = vsel %vm1183, %v1337, %v1176
        %v1373 = vsel %vm1183, %v1339, %v1178
        %v1374 = vsel %vm1183, %v1341, %v1180
        %v1375 = vsel %vm1183, %v1343, %v1182
        %1408 = vrot.lane.b32.xlu0 %v1344, 96
        %v1409 = vpop.permute.xlu0 %1408
        %1410 = vrot.lane.b32.xlu0 %v1345, 96
        %v1411 = vpop.permute.xlu0 %1410
        %1412 = vrot.lane.b32.xlu0 %v1346, 96
        %v1413 = vpop.permute.xlu0 %1412
        %1414 = vrot.lane.b32.xlu0 %v1347, 96
        %v1415 = vpop.permute.xlu0 %1414
        %1416 = vrot.lane.b32.xlu0 %v1348, 96
        %v1417 = vpop.permute.xlu0 %1416
        %1418 = vrot.lane.b32.xlu0 %v1349, 96
        %v1419 = vpop.permute.xlu0 %1418
        %1420 = vrot.lane.b32.xlu0 %v1350, 96
        %v1421 = vpop.permute.xlu0 %1420
        %1422 = vrot.lane.b32.xlu0 %v1351, 96
        %v1423 = vpop.permute.xlu0 %1422
        %1424 = vrot.lane.b32.xlu0 %v1352, 96
        %v1425 = vpop.permute.xlu0 %1424
        %1426 = vrot.lane.b32.xlu0 %v1353, 96
        %v1427 = vpop.permute.xlu0 %1426
        %1428 = vrot.lane.b32.xlu0 %v1354, 96
        %v1429 = vpop.permute.xlu0 %1428
        %1430 = vrot.lane.b32.xlu0 %v1355, 96
        %v1431 = vpop.permute.xlu0 %1430
        %1432 = vrot.lane.b32.xlu0 %v1356, 96
        %v1433 = vpop.permute.xlu0 %1432
        %1434 = vrot.lane.b32.xlu0 %v1357, 96
        %v1435 = vpop.permute.xlu0 %1434
        %1436 = vrot.lane.b32.xlu0 %v1358, 96
        %v1437 = vpop.permute.xlu0 %1436
        %1438 = vrot.lane.b32.xlu0 %v1359, 96
        %v1439 = vpop.permute.xlu0 %1438
        %1440 = vrot.lane.b32.xlu0 %v1360, 96
        %v1441 = vpop.permute.xlu0 %1440
        %1442 = vrot.lane.b32.xlu0 %v1361, 96
        %v1443 = vpop.permute.xlu0 %1442
        %1444 = vrot.lane.b32.xlu0 %v1362, 96
        %v1445 = vpop.permute.xlu0 %1444
        %1446 = vrot.lane.b32.xlu0 %v1363, 96
        %v1447 = vpop.permute.xlu0 %1446
        %1448 = vrot.lane.b32.xlu0 %v1364, 96
        %v1449 = vpop.permute.xlu0 %1448
        %1450 = vrot.lane.b32.xlu0 %v1365, 96
        %v1451 = vpop.permute.xlu0 %1450
        %1452 = vrot.lane.b32.xlu0 %v1366, 96
        %v1453 = vpop.permute.xlu0 %1452
        %1454 = vrot.lane.b32.xlu0 %v1367, 96
        %v1455 = vpop.permute.xlu0 %1454
        %1456 = vrot.lane.b32.xlu0 %v1368, 96
        %v1457 = vpop.permute.xlu0 %1456
        %1458 = vrot.lane.b32.xlu0 %v1369, 96
        %v1459 = vpop.permute.xlu0 %1458
        %1460 = vrot.lane.b32.xlu0 %v1370, 96
        %v1461 = vpop.permute.xlu0 %1460
        %1462 = vrot.lane.b32.xlu0 %v1371, 96
        %v1463 = vpop.permute.xlu0 %1462
        %1464 = vrot.lane.b32.xlu0 %v1372, 96
        %v1465 = vpop.permute.xlu0 %1464
        %1466 = vrot.lane.b32.xlu0 %v1373, 96
        %v1467 = vpop.permute.xlu0 %1466
        %1468 = vrot.lane.b32.xlu0 %v1374, 96
        %v1469 = vpop.permute.xlu0 %1468
        %1470 = vrot.lane.b32.xlu0 %v1375, 96
        %v1471 = vpop.permute.xlu0 %1470
        %v1504 = vmul.f32 %v865, %v1409
        %v1505 = vmul.f32 %v868, %v1411
        %v1506 = vmul.f32 %v873, %v1413
        %v1507 = vmul.f32 %v876, %v1415
        %v1508 = vmul.f32 %v881, %v1417
        %v1509 = vmul.f32 %v884, %v1419
        %v1510 = vmul.f32 %v889, %v1421
        %v1511 = vmul.f32 %v892, %v1423
        %v1512 = vmul.f32 %v897, %v1425
        %v1513 = vmul.f32 %v900, %v1427
        %v1514 = vmul.f32 %v905, %v1429
        %v1515 = vmul.f32 %v908, %v1431
        %v1516 = vmul.f32 %v913, %v1433
        %v1517 = vmul.f32 %v916, %v1435
        %v1518 = vmul.f32 %v921, %v1437
        %v1519 = vmul.f32 %v924, %v1439
        %v1520 = vmul.f32 %v929, %v1441
        %v1521 = vmul.f32 %v932, %v1443
        %v1522 = vmul.f32 %v937, %v1445
        %v1523 = vmul.f32 %v940, %v1447
        %v1524 = vmul.f32 %v945, %v1449
        %v1525 = vmul.f32 %v948, %v1451
        %v1526 = vmul.f32 %v953, %v1453
        %v1527 = vmul.f32 %v956, %v1455
        %v1528 = vmul.f32 %v961, %v1457
        %v1529 = vmul.f32 %v964, %v1459
        %v1530 = vmul.f32 %v969, %v1461
        %v1531 = vmul.f32 %v972, %v1463
        %v1532 = vmul.f32 %v977, %v1465
        %v1533 = vmul.f32 %v980, %v1467
        %v1534 = vmul.f32 %v985, %v1469
        %v1535 = vmul.f32 %v988, %v1471
        %v1536 = vpack.c.bf16 %v1505, %v1504
        %v1537 = vpack.c.bf16 %v1507, %v1506
        %v1538 = vpack.c.bf16 %v1509, %v1508
        %v1539 = vpack.c.bf16 %v1511, %v1510
        %v1540 = vpack.c.bf16 %v1513, %v1512
        %v1541 = vpack.c.bf16 %v1515, %v1514
        %v1542 = vpack.c.bf16 %v1517, %v1516
        %v1543 = vpack.c.bf16 %v1519, %v1518
        %v1544 = vpack.c.bf16 %v1521, %v1520
        %v1545 = vpack.c.bf16 %v1523, %v1522
        %v1546 = vpack.c.bf16 %v1525, %v1524
        %v1547 = vpack.c.bf16 %v1527, %v1526
        %v1548 = vpack.c.bf16 %v1529, %v1528
        %v1549 = vpack.c.bf16 %v1531, %v1530
        %v1550 = vpack.c.bf16 %v1533, %v1532
        %v1551 = vpack.c.bf16 %v1535, %v1534
        %v1552 = vld [vmem:[%s6] sm:$0x3]
        %v1555 = vunpack.c.l.s4 1966171168
        %v1556 = vunpack.c.0.s8 %v1555
        %v1557 = vlaneseq
        %v1558 = vshrl.u32 %v1557, 7
        %v1559 = vsub.s32 %v1556, %v1558
        %v1560 = vrot.slane %v1552, %v1559
        %v1561 = vcombine.high %v1560, %v1560
        %v1563 = vunpack.c.l.s4 1966171168
        %v1564 = vunpack.c.0.s8 %v1563
        %v1565 = vlaneseq
        %v1566 = vshrl.u32 %v1565, 7
        %v1567 = vsub.s32 %v1564, %v1566
        %v1568 = vrot.slane %v1560, %v1567
        %v1570 = vunpack.c.l.s4 1966171168
        %v1571 = vunpack.c.0.s8 %v1570
        %v1572 = vlaneseq
        %v1573 = vshrl.u32 %v1572, 7
        %v1574 = vsub.s32 %v1571, %v1573
        %v1575 = vrot.slane %v1561, %v1574
        %1578 = vmatprep.subr.bf16.mxu0 0
        %1579 = vmatpush1.bf16.msra.mxu0 %v1536
        %1580 = vmatprep.subr.bf16.mxu0 0
        %1581 = vmatpush1.bf16.msra.mxu0 %v1537
        %1582 = vmatprep.subr.bf16.mxu0 0
        %1583 = vmatpush1.bf16.msra.mxu0 %v1538
        %1584 = vmatprep.subr.bf16.mxu0 0
        %1585 = vmatpush1.bf16.msra.mxu0 %v1539
        %1586 = vmatprep.subr.bf16.mxu0 0
        %1587 = vmatpush1.bf16.msra.mxu0 %v1540
        %1588 = vmatprep.subr.bf16.mxu0 0
        %1589 = vmatpush1.bf16.msra.mxu0 %v1541
        %1590 = vmatprep.subr.bf16.mxu0 0
        %1591 = vmatpush1.bf16.msra.mxu0 %v1542
        %1592 = vmatprep.subr.bf16.mxu0 0
        %1593 = vmatpush1.bf16.msra.mxu0 %v1543
        %1594 = vmatprep.subr.bf16.mxu0 0
        %1595 = vmatpush1.bf16.msra.mxu0 %v1544
        %1596 = vmatprep.subr.bf16.mxu0 0
        %1597 = vmatpush1.bf16.msra.mxu0 %v1545
        %1598 = vmatprep.subr.bf16.mxu0 0
        %1599 = vmatpush1.bf16.msra.mxu0 %v1546
        %1600 = vmatprep.subr.bf16.mxu0 0
        %1601 = vmatpush1.bf16.msra.mxu0 %v1547
        %1602 = vmatprep.subr.bf16.mxu0 0
        %1603 = vmatpush1.bf16.msra.mxu0 %v1548
        %1604 = vmatprep.subr.bf16.mxu0 0
        %1605 = vmatpush1.bf16.msra.mxu0 %v1549
        %1606 = vmatprep.subr.bf16.mxu0 0
        %1607 = vmatpush1.bf16.msra.mxu0 %v1550
        %1608 = vmatprep.subr.bf16.mxu0 0
        %1609 = vmatpush1.bf16.msra.mxu0 %v1551
        %1610 = vmatprep.mubr.bf16.mxu0 %v1575
        %1611 = vmatmul.mubr.bf16.gmra.mrb[0].mxu0 %v1568
        %v1612 = vpop.f32.mrb[0].mxu0
        %v1613 = vadd.f32 0.0, %v1612
        %v1614 = vpop.f32.mrb[0].mxu0
        %v1615 = vpop.f32.mrb[0].mxu0
        %v1616 = vpop.f32.mrb[0].mxu0
        %1617 = vdwg.mxu0
        %v1618 = vpack.c.bf16 %v1613, %v1613
        %v1619 = vld [vmem:[%s7] sm:$0xf]
        %v1620 = vld [vmem:[%s7 + $0x4] sm:$0xf]
        %v1621 = vld [vmem:[%s7 + $0x8] sm:$0xf]
        %v1622 = vld [vmem:[%s7 + $0xc] sm:$0xf]
        %v1623 = vld [vmem:[%s7 + $0x10] sm:$0xf]
        %v1624 = vld [vmem:[%s7 + $0x14] sm:$0xf]
        %v1625 = vld [vmem:[%s7 + $0x18] sm:$0xf]
        %v1626 = vld [vmem:[%s7 + $0x1c] sm:$0xf]
        %v1627 = vld [vmem:[%s8] sm:$0xf]
        %v1628 = vld [vmem:[%s8 + $0x4] sm:$0xf]
        %v1629 = vld [vmem:[%s8 + $0x8] sm:$0xf]
        %v1630 = vld [vmem:[%s8 + $0xc] sm:$0xf]
        %v1631 = vld [vmem:[%s8 + $0x10] sm:$0xf]
        %v1632 = vld [vmem:[%s8 + $0x14] sm:$0xf]
        %v1633 = vld [vmem:[%s8 + $0x18] sm:$0xf]
        %v1634 = vld [vmem:[%s8 + $0x1c] sm:$0xf]
        %v1635 = vld [vmem:[%s8 + $0x20] sm:$0xf]
        %v1636 = vld [vmem:[%s8 + $0x24] sm:$0xf]
        %v1637 = vld [vmem:[%s8 + $0x28] sm:$0xf]
        %v1638 = vld [vmem:[%s8 + $0x2c] sm:$0xf]
        %v1639 = vld [vmem:[%s8 + $0x30] sm:$0xf]
        %v1640 = vld [vmem:[%s8 + $0x34] sm:$0xf]
        %v1641 = vld [vmem:[%s8 + $0x38] sm:$0xf]
        %v1642 = vld [vmem:[%s8 + $0x3c] sm:$0xf]
        %v1643 = vld [vmem:[%s8 + $0x40] sm:$0xf]
        %v1644 = vld [vmem:[%s8 + $0x44] sm:$0xf]
        %v1645 = vld [vmem:[%s8 + $0x48] sm:$0xf]
        %v1646 = vld [vmem:[%s8 + $0x4c] sm:$0xf]
        %v1647 = vld [vmem:[%s8 + $0x50] sm:$0xf]
        %v1648 = vld [vmem:[%s8 + $0x54] sm:$0xf]
        %v1649 = vld [vmem:[%s8 + $0x58] sm:$0xf]
        %v1650 = vld [vmem:[%s8 + $0x5c] sm:$0xf]
        %v1651 = vld [vmem:[%s8 + $0x60] sm:$0xf]
        %v1652 = vld [vmem:[%s8 + $0x64] sm:$0xf]
        %v1653 = vld [vmem:[%s8 + $0x68] sm:$0xf]
        %v1654 = vld [vmem:[%s8 + $0x6c] sm:$0xf]
        %v1655 = vld [vmem:[%s8 + $0x70] sm:$0xf]
        %v1656 = vld [vmem:[%s8 + $0x74] sm:$0xf]
        %v1657 = vld [vmem:[%s8 + $0x78] sm:$0xf]
        %v1658 = vld [vmem:[%s8 + $0x7c] sm:$0xf]
        %v1659 = vld [vmem:[%s8 + $0x80] sm:$0xf]
        %v1660 = vld [vmem:[%s8 + $0x84] sm:$0xf]
        %v1661 = vld [vmem:[%s8 + $0x88] sm:$0xf]
        %v1662 = vld [vmem:[%s8 + $0x8c] sm:$0xf]
        %v1663 = vld [vmem:[%s8 + $0x90] sm:$0xf]
        %v1664 = vld [vmem:[%s8 + $0x94] sm:$0xf]
        %v1665 = vld [vmem:[%s8 + $0x98] sm:$0xf]
        %v1666 = vld [vmem:[%s8 + $0x9c] sm:$0xf]
        %v1667 = vld [vmem:[%s8 + $0xa0] sm:$0xf]
        %v1668 = vld [vmem:[%s8 + $0xa4] sm:$0xf]
        %v1669 = vld [vmem:[%s8 + $0xa8] sm:$0xf]
        %v1670 = vld [vmem:[%s8 + $0xac] sm:$0xf]
        %v1671 = vld [vmem:[%s8 + $0xb0] sm:$0xf]
        %v1672 = vld [vmem:[%s8 + $0xb4] sm:$0xf]
        %v1673 = vld [vmem:[%s8 + $0xb8] sm:$0xf]
        %v1674 = vld [vmem:[%s8 + $0xbc] sm:$0xf]
        %v1675 = vld [vmem:[%s8 + $0xc0] sm:$0xf]
        %v1676 = vld [vmem:[%s8 + $0xc4] sm:$0xf]
        %v1677 = vld [vmem:[%s8 + $0xc8] sm:$0xf]
        %v1678 = vld [vmem:[%s8 + $0xcc] sm:$0xf]
        %v1679 = vld [vmem:[%s8 + $0xd0] sm:$0xf]
        %v1680 = vld [vmem:[%s8 + $0xd4] sm:$0xf]
        %v1681 = vld [vmem:[%s8 + $0xd8] sm:$0xf]
        %v1682 = vld [vmem:[%s8 + $0xdc] sm:$0xf]
        %v1683 = vld [vmem:[%s8 + $0xe0] sm:$0xf]
        %v1684 = vld [vmem:[%s8 + $0xe4] sm:$0xf]
        %v1685 = vld [vmem:[%s8 + $0xe8] sm:$0xf]
        %v1686 = vld [vmem:[%s8 + $0xec] sm:$0xf]
        %v1687 = vld [vmem:[%s8 + $0xf0] sm:$0xf]
        %v1688 = vld [vmem:[%s8 + $0xf4] sm:$0xf]
        %v1689 = vld [vmem:[%s8 + $0xf8] sm:$0xf]
        %v1690 = vld [vmem:[%s8 + $0xfc] sm:$0xf]
        %v1693 = vunpack.c.l.s4 1966171168
        %v1694 = vunpack.c.0.s8 %v1693
        %v1695 = vlaneseq
        %v1696 = vshrl.u32 %v1695, 7
        %v1697 = vsub.s32 %v1694, %v1696
        %v1698 = vrot.slane %v407, %v1697
        %v1699 = vcombine.high %v1698, %v1698
        %v1701 = vunpack.c.l.s4 1966171168
        %v1702 = vunpack.c.0.s8 %v1701
        %v1703 = vlaneseq
        %v1704 = vshrl.u32 %v1703, 7
        %v1705 = vsub.s32 %v1702, %v1704
        %v1706 = vrot.slane %v1698, %v1705
        %v1708 = vunpack.c.l.s4 1966171168
        %v1709 = vunpack.c.0.s8 %v1708
        %v1710 = vlaneseq
        %v1711 = vshrl.u32 %v1710, 7
        %v1712 = vsub.s32 %v1709, %v1711
        %v1713 = vrot.slane %v1699, %v1712
        %v1714 = vcombine.high %v1706, %v1706
        %v1715 = vcombine.high %v1713, %v1713
        %v1784 = vunpack.c.l.b16 %v1627
        %v1785 = vunpack.c.l.b16 %v1628
        %v1786 = vunpack.c.l.b16 %v1629
        %v1787 = vunpack.c.l.b16 %v1630
        %v1788 = vunpack.c.l.b16 %v1631
        %v1789 = vunpack.c.l.b16 %v1632
        %v1790 = vunpack.c.l.b16 %v1633
        %v1791 = vunpack.c.l.b16 %v1634
        %v1792 = vunpack.c.l.b16 %v1635
        %v1793 = vunpack.c.l.b16 %v1636
        %v1794 = vunpack.c.l.b16 %v1637
        %v1795 = vunpack.c.l.b16 %v1638
        %v1796 = vunpack.c.l.b16 %v1639
        %v1797 = vunpack.c.l.b16 %v1640
        %v1798 = vunpack.c.l.b16 %v1641
        %v1799 = vunpack.c.l.b16 %v1642
        %v1800 = vunpack.c.l.b16 %v1643
        %v1801 = vunpack.c.l.b16 %v1644
        %v1802 = vunpack.c.l.b16 %v1645
        %v1803 = vunpack.c.l.b16 %v1646
        %v1804 = vunpack.c.l.b16 %v1647
        %v1805 = vunpack.c.l.b16 %v1648
        %v1806 = vunpack.c.l.b16 %v1649
        %v1807 = vunpack.c.l.b16 %v1650
        %v1808 = vunpack.c.l.b16 %v1651
        %v1809 = vunpack.c.l.b16 %v1652
        %v1810 = vunpack.c.l.b16 %v1653
        %v1811 = vunpack.c.l.b16 %v1654
        %v1812 = vunpack.c.l.b16 %v1655
        %v1813 = vunpack.c.l.b16 %v1656
        %v1814 = vunpack.c.l.b16 %v1657
        %v1815 = vunpack.c.l.b16 %v1658
        %v1816 = vunpack.c.l.b16 %v1659
        %v1817 = vunpack.c.l.b16 %v1660
        %v1818 = vunpack.c.l.b16 %v1661
        %v1819 = vunpack.c.l.b16 %v1662
        %v1820 = vunpack.c.l.b16 %v1663
        %v1821 = vunpack.c.l.b16 %v1664
        %v1822 = vunpack.c.l.b16 %v1665
        %v1823 = vunpack.c.l.b16 %v1666
        %v1824 = vunpack.c.l.b16 %v1667
        %v1825 = vunpack.c.l.b16 %v1668
        %v1826 = vunpack.c.l.b16 %v1669
        %v1827 = vunpack.c.l.b16 %v1670
        %v1828 = vunpack.c.l.b16 %v1671
        %v1829 = vunpack.c.l.b16 %v1672
        %v1830 = vunpack.c.l.b16 %v1673
        %v1831 = vunpack.c.l.b16 %v1674
        %v1832 = vunpack.c.l.b16 %v1675
        %v1833 = vunpack.c.l.b16 %v1676
        %v1834 = vunpack.c.l.b16 %v1677
        %v1835 = vunpack.c.l.b16 %v1678
        %v1836 = vunpack.c.l.b16 %v1679
        %v1837 = vunpack.c.l.b16 %v1680
        %v1838 = vunpack.c.l.b16 %v1681
        %v1839 = vunpack.c.l.b16 %v1682
        %v1840 = vunpack.c.l.b16 %v1683
        %v1841 = vunpack.c.l.b16 %v1684
        %v1842 = vunpack.c.l.b16 %v1685
        %v1843 = vunpack.c.l.b16 %v1686
        %v1844 = vunpack.c.l.b16 %v1687
        %v1845 = vunpack.c.l.b16 %v1688
        %v1846 = vunpack.c.l.b16 %v1689
        %v1847 = vunpack.c.l.b16 %v1690
        %v1848 = vpack.c.b16 %v1785, %v1784
        %v1849 = vpack.c.b16 %v1787, %v1786
        %v1850 = vpack.c.b16 %v1789, %v1788
        %v1851 = vpack.c.b16 %v1791, %v1790
        %v1852 = vpack.c.b16 %v1793, %v1792
        %v1853 = vpack.c.b16 %v1795, %v1794
        %v1854 = vpack.c.b16 %v1797, %v1796
        %v1855 = vpack.c.b16 %v1799, %v1798
        %v1856 = vpack.c.b16 %v1801, %v1800
        %v1857 = vpack.c.b16 %v1803, %v1802
        %v1858 = vpack.c.b16 %v1805, %v1804
        %v1859 = vpack.c.b16 %v1807, %v1806
        %v1860 = vpack.c.b16 %v1809, %v1808
        %v1861 = vpack.c.b16 %v1811, %v1810
        %v1862 = vpack.c.b16 %v1813, %v1812
        %v1863 = vpack.c.b16 %v1815, %v1814
        %v1864 = vpack.c.b16 %v1817, %v1816
        %v1865 = vpack.c.b16 %v1819, %v1818
        %v1866 = vpack.c.b16 %v1821, %v1820
        %v1867 = vpack.c.b16 %v1823, %v1822
        %v1868 = vpack.c.b16 %v1825, %v1824
        %v1869 = vpack.c.b16 %v1827, %v1826
        %v1870 = vpack.c.b16 %v1829, %v1828
        %v1871 = vpack.c.b16 %v1831, %v1830
        %v1872 = vpack.c.b16 %v1833, %v1832
        %v1873 = vpack.c.b16 %v1835, %v1834
        %v1874 = vpack.c.b16 %v1837, %v1836
        %v1875 = vpack.c.b16 %v1839, %v1838
        %v1876 = vpack.c.b16 %v1841, %v1840
        %v1877 = vpack.c.b16 %v1843, %v1842
        %v1878 = vpack.c.b16 %v1845, %v1844
        %v1879 = vpack.c.b16 %v1847, %v1846
        %1912 = vmatprep.subr.bf16.mxu0 0
        %1913 = vmatpush1.bf16.msra.mxu0 %v1848
        %1914 = vmatprep.subr.bf16.mxu0 0
        %1915 = vmatpush1.bf16.msra.mxu0 %v1849
        %1916 = vmatprep.subr.bf16.mxu0 0
        %1917 = vmatpush1.bf16.msra.mxu0 %v1850
        %1918 = vmatprep.subr.bf16.mxu0 0
        %1919 = vmatpush1.bf16.msra.mxu0 %v1851
        %1920 = vmatprep.subr.bf16.mxu0 0
        %1921 = vmatpush1.bf16.msra.mxu0 %v1852
        %1922 = vmatprep.subr.bf16.mxu0 0
        %1923 = vmatpush1.bf16.msra.mxu0 %v1853
        %1924 = vmatprep.subr.bf16.mxu0 0
        %1925 = vmatpush1.bf16.msra.mxu0 %v1854
        %1926 = vmatprep.subr.bf16.mxu0 0
        %1927 = vmatpush1.bf16.msra.mxu0 %v1855
        %1928 = vmatprep.subr.bf16.mxu0 0
        %1929 = vmatpush1.bf16.msra.mxu0 %v1856
        %1930 = vmatprep.subr.bf16.mxu0 0
        %1931 = vmatpush1.bf16.msra.mxu0 %v1857
        %1932 = vmatprep.subr.bf16.mxu0 0
        %1933 = vmatpush1.bf16.msra.mxu0 %v1858
        %1934 = vmatprep.subr.bf16.mxu0 0
        %1935 = vmatpush1.bf16.msra.mxu0 %v1859
        %1936 = vmatprep.subr.bf16.mxu0 0
        %1937 = vmatpush1.bf16.msra.mxu0 %v1860
        %1938 = vmatprep.subr.bf16.mxu0 0
        %1939 = vmatpush1.bf16.msra.mxu0 %v1861
        %1940 = vmatprep.subr.bf16.mxu0 0
        %1941 = vmatpush1.bf16.msra.mxu0 %v1862
        %1942 = vmatprep.subr.bf16.mxu0 0
        %1943 = vmatpush1.bf16.msra.mxu0 %v1863
        %1944 = vmatprep.mubr.bf16.mxu0 %v1713
        %1945 = vmatmul.mubr.bf16.gmra.mrb[0].mxu0 %v1706
        %v1946 = vpop.f32.mrb[0].mxu0
        %v1947 = vadd.f32 0.0, %v1946
        %v1948 = vpop.f32.mrb[0].mxu0
        %v1949 = vpop.f32.mrb[0].mxu0
        %v1950 = vpop.f32.mrb[0].mxu0
        %1951 = vdwg.mxu0
        %1952 = vmatprep.subr.bf16.mxu0 0
        %1953 = vmatpush1.bf16.msra.mxu0 %v1864
        %1954 = vmatprep.subr.bf16.mxu0 0
        %1955 = vmatpush1.bf16.msra.mxu0 %v1865
        %1956 = vmatprep.subr.bf16.mxu0 0
        %1957 = vmatpush1.bf16.msra.mxu0 %v1866
        %1958 = vmatprep.subr.bf16.mxu0 0
        %1959 = vmatpush1.bf16.msra.mxu0 %v1867
        %1960 = vmatprep.subr.bf16.mxu0 0
        %1961 = vmatpush1.bf16.msra.mxu0 %v1868
        %1962 = vmatprep.subr.bf16.mxu0 0
        %1963 = vmatpush1.bf16.msra.mxu0 %v1869
        %1964 = vmatprep.subr.bf16.mxu0 0
        %1965 = vmatpush1.bf16.msra.mxu0 %v1870
        %1966 = vmatprep.subr.bf16.mxu0 0
        %1967 = vmatpush1.bf16.msra.mxu0 %v1871
        %1968 = vmatprep.subr.bf16.mxu0 0
        %1969 = vmatpush1.bf16.msra.mxu0 %v1872
        %1970 = vmatprep.subr.bf16.mxu0 0
        %1971 = vmatpush1.bf16.msra.mxu0 %v1873
        %1972 = vmatprep.subr.bf16.mxu0 0
        %1973 = vmatpush1.bf16.msra.mxu0 %v1874
        %1974 = vmatprep.subr.bf16.mxu0 0
        %1975 = vmatpush1.bf16.msra.mxu0 %v1875
        %1976 = vmatprep.subr.bf16.mxu0 0
        %1977 = vmatpush1.bf16.msra.mxu0 %v1876
        %1978 = vmatprep.subr.bf16.mxu0 0
        %1979 = vmatpush1.bf16.msra.mxu0 %v1877
        %1980 = vmatprep.subr.bf16.mxu0 0
        %1981 = vmatpush1.bf16.msra.mxu0 %v1878
        %1982 = vmatprep.subr.bf16.mxu0 0
        %1983 = vmatpush1.bf16.msra.mxu0 %v1879
        %1984 = vmatprep.mubr.bf16.mxu0 %v1715
        %1985 = vmatmul.mubr.bf16.gmra.mrb[0].mxu0 %v1714
        %v1986 = vpop.f32.mrb[0].mxu0
        %v1987 = vadd.f32 %v1947, %v1986
        %v1988 = vpop.f32.mrb[0].mxu0
        %v1989 = vpop.f32.mrb[0].mxu0
        %v1990 = vpop.f32.mrb[0].mxu0
        %1991 = vdwg.mxu0
        %v2000 = vunpack.c.l.b16 %v1619
        %v2001 = vunpack.c.l.b16 %v1620
        %v2002 = vunpack.c.l.b16 %v1621
        %v2003 = vunpack.c.l.b16 %v1622
        %v2004 = vunpack.c.l.b16 %v1623
        %v2005 = vunpack.c.l.b16 %v1624
        %v2006 = vunpack.c.l.b16 %v1625
        %v2007 = vunpack.c.l.b16 %v1626
        %v2008 = vpack.c.b16 %v2001, %v2000
        %v2009 = vpack.c.b16 %v2003, %v2002
        %v2010 = vpack.c.b16 %v2005, %v2004
        %v2011 = vpack.c.b16 %v2007, %v2006
        %vm2016 = vcmask 523264
        %v2018 = vsel %vm2016, %v1618, 0
        %2020 = vmatprep.subr.bf16.mxu0 0
        %2021 = vmatpush1.bf16.msra.mxu0 %v2008
        %2022 = vmatprep.subr.bf16.mxu0 0
        %2023 = vmatpush1.bf16.msra.mxu0 %v2009
        %2024 = vmatprep.subr.bf16.mxu0 0
        %2025 = vmatpush1.bf16.msra.mxu0 %v2010
        %2026 = vmatprep.subr.bf16.mxu0 0
        %2027 = vmatpush1.bf16.msra.mxu0 %v2011
        %2028 = vmatprep.subr.bf16.mxu0 0
        %2029 = vmatpush1.bf16.msra.mxu0 0
        %2030 = vmatprep.subr.bf16.mxu0 0
        %2031 = vmatpush1.bf16.msra.mxu0 0
        %2032 = vmatprep.subr.bf16.mxu0 0
        %2033 = vmatpush1.bf16.msra.mxu0 0
        %2034 = vmatprep.subr.bf16.mxu0 0
        %2035 = vmatpush1.bf16.msra.mxu0 0
        %2036 = vmatprep.subr.bf16.mxu0 0
        %2037 = vmatpush1.bf16.msra.mxu0 0
        %2038 = vmatprep.subr.bf16.mxu0 0
        %2039 = vmatpush1.bf16.msra.mxu0 0
        %2040 = vmatprep.subr.bf16.mxu0 0
        %2041 = vmatpush1.bf16.msra.mxu0 0
        %2042 = vmatprep.subr.bf16.mxu0 0
        %2043 = vmatpush1.bf16.msra.mxu0 0
        %2044 = vmatprep.subr.bf16.mxu0 0
        %2045 = vmatpush1.bf16.msra.mxu0 0
        %2046 = vmatprep.subr.bf16.mxu0 0
        %2047 = vmatpush1.bf16.msra.mxu0 0
        %2048 = vmatprep.subr.bf16.mxu0 0
        %2049 = vmatpush1.bf16.msra.mxu0 0
        %2050 = vmatprep.subr.bf16.mxu0 0
        %2051 = vmatpush1.bf16.msra.mxu0 0
        %2052 = vmatprep.mubr.bf16.mxu0 0
        %2053 = vmatmul.mubr.bf16.gmra.mrb[0].mxu0 %v2018
        %v2054 = vpop.f32.mrb[0].mxu0
        %v2055 = vadd.f32 %v1987, %v2054
        %v2056 = vpop.f32.mrb[0].mxu0
        %v2057 = vpop.f32.mrb[0].mxu0
        %v2058 = vpop.f32.mrb[0].mxu0
        %2059 = vdwg.mxu0
        %v2060 = vld [vmem:[%s9] sm:$0x1]
        %v2061 = vadd.f32 %v2055, %v2060
        %2062 = vst [vmem:[%s364] sm:$0x1] %v2061
        %s2063 = sand.u32 %s252, 1
        %s2064 = scalar_lea.sflag [#allocation3], %s2063
        %s2065 = sand.u32 %s252, 1
        %s2066 = scalar_lea.vmem [#allocation2], %s2065
        // Predicated region
        $region61: #{hiflatnet_forward.1} parent=59 // pred_check
          %p2067 = pneg %p262
        $region62: #{hiflatnet_forward.1} parent=59 // pred_check_branch
          %2069 = sbr.rel (%p2067) target = $region64
        $region63: #{hiflatnet_forward.1} parent=59 // pred_region
          %s2071 = ssub.s32 16, 16
          %2072 = vsyncadd %s2064, %s2071
          %s2073 = smul.addr %s24, 16
          %s2074 = scalar_lea.hbm %s10, %s2073
          %s2076 = sshll.u32 %s2066, 4
          %s2077 = int_to_ptr.vmem [resolvable:$true] %s2076
          %2079 = dma.vmem_to_hbm [thread:$0]  %s2077, 16, %s2074, %s2064
        $region64: #{hiflatnet_forward.1} parent=59 // pred_fallthru
          _
      $region60: #{hiflatnet_forward.1} parent=5 // pred_fallthru
        _
      %p2080 = scmp.le.s32.totalorder 2, %s19
      // Predicated region
      $region65: #{hiflatnet_forward.1} parent=5 // pred_check
        %p2081 = pneg %p2080
      $region66: #{hiflatnet_forward.1} parent=5 // pred_check_branch
        %2083 = sbr.rel (%p2081) target = $region68
      $region67: #{hiflatnet_forward.1} parent=5 // pred_region
        %s2084 = ssub.s32 %s19, 2
        // Predicated region
        $region69: #{hiflatnet_forward.1} parent=67 // pred_check
          %p2085 = pneg %p268
        $region70: #{hiflatnet_forward.1} parent=67 // pred_check_branch
          %2087 = sbr.rel (%p2085) target = $region72
        $region71: #{hiflatnet_forward.1} parent=67 // pred_region
          %s2088 = sand.u32 %s253, 1
          %s2089 = scalar_lea.sflag [#allocation3], %s2088
          %s2090 = sand.u32 %s253, 1
          %s2091 = scalar_lea.vmem [#allocation2], %s2090
          %2092 = dma.done %s2089, 16
        $region72: #{hiflatnet_forward.1} parent=67 // pred_fallthru
          _
      $region68: #{hiflatnet_forward.1} parent=5 // pred_fallthru
        _
    $region6: #{hiflatnet_forward.1} parent=1 // loop_footer
      %s23 = sadd.s32 1, %s19
    $region7: #{hiflatnet_forward.1} parent=1 // loop_footer_branch
      %18 = sbr.rel target = $region3
    $region8: #{hiflatnet_forward.1} parent=1 // loop_exit
      _
    %2093 = vsyncpa [#allocation3], 1
    %s2094 = scalar_lea.sflag [#allocation3], 1
    %2095 = vsyncpa %s2094, 1

</llo_original>
